<compile_context>
chip_gen: v7x
topology: tpu7x:2x2x1
jax: 0.10.0
libtpu: 0.0.40
codegen_flags: <defaults>
</compile_context>

<pallas_src>
import functools

import jax
import jax.numpy as jnp
from jax.experimental import pallas as pl
from jax.experimental.pallas import tpu as pltpu

LANE = 128                                      # matmul lane width (feature padding target)
_RELU = (True, True, False, True, True, False)  # ReLU after layers 1, 2, 4, 5
_N_LAYERS = 6


def _autoencoder_kernel(x_ref, w_ref, b_ref, out_ref):
    # x_ref  : (TB, D_IN)          f32 activations, true feature width
    # w_ref  : (6, LANE, LANE)     bf16 packed weights, pre-transposed (in, out), zero-padded
    # b_ref  : (6, 1, LANE)        f32 packed biases (zero in padded columns)
    # out_ref: (TB, D_IN)          f32 reconstruction, true feature width
    tb, d_in = x_ref.shape
    x = x_ref[...].astype(jnp.float32)

    # Zero-extend features to the 128-lane MXU width (exact zeros are required so the
    # zero-padded weight rows cannot pick up NaN/Inf garbage via 0 * x).
    if d_in < LANE:
        h = jnp.concatenate(
            [x, jnp.zeros((tb, LANE - d_in), jnp.float32)], axis=-1)
    else:
        h = x

    for l, relu in enumerate(_RELU):            # 6 fixed layers, statically unrolled
        w = w_ref[l]                            # (LANE, LANE) bf16 -> MXU operand
        b = b_ref[l]                            # (1, LANE)    f32  -> VPU bias add
        h = jnp.dot(h.astype(w.dtype), w,
                    preferred_element_type=jnp.float32) + b
        if relu:
            h = jnp.maximum(h, 0.0)

    out_ref[...] = h[:, :d_in].astype(out_ref.dtype)


def init_params(key, input_dim, latent_dim, dtype=jnp.float32):
    """Deterministic init matching nn.Linear (W: (out,in) ~ U(+-1/sqrt(fan_in)))."""
    dims = [
        (input_dim, 64), (64, 32), (32, latent_dim),     # encoder
        (latent_dim, 32), (32, 64), (64, input_dim),     # decoder
    ]
    params = []
    for fan_in, fan_out in dims:
        key, kw, kb = jax.random.split(key, 3)
        bound = 1.0 / jnp.sqrt(fan_in)
        w_t = jax.random.uniform(kw, (fan_in, fan_out), dtype, -bound, bound)  # (in, out)
        b = jax.random.uniform(kb, (fan_out,), dtype, -bound, bound)
        params.append((w_t, b))
    return params


def pack_params(params):
    """Pack the 6 (W,b) pairs into one padded bf16 weight slab + one f32 bias slab."""
    w_slab = jnp.zeros((_N_LAYERS, LANE, LANE), jnp.float32)
    b_slab = jnp.zeros((_N_LAYERS, 1, LANE), jnp.float32)
    for l, (w_t, b) in enumerate(params):
        fan_in, fan_out = w_t.shape
        assert fan_in <= LANE and fan_out <= LANE, (
            f"layer {l}: dims ({fan_in},{fan_out}) exceed LANE={LANE}; "
            "packing would silently clip")
        w_slab = w_slab.at[l, :fan_in, :fan_out].set(w_t.astype(jnp.float32))
        b_slab = b_slab.at[l, 0, :fan_out].set(b.astype(jnp.float32))
    return w_slab.astype(jnp.bfloat16), b_slab


def _pick_tb(batch, *, max_tb=1024, min_steps=4):
    """Largest 128-row-multiple tile <= max_tb that still leaves >= min_steps grid steps.

    >=2 steps keeps both v7x TensorCores fed via the "parallel" batch axis and gives the
    DMA pipeline something to overlap; >=4 is the sweet spot from the perf review.
    """
    if batch <= 128:
        return 128
    tb = min(max_tb, -(-batch // min_steps))
    return max(128, (tb // 128) * 128)


@functools.partial(jax.jit, static_argnames=("tb",))
def _autoencoder_forward_jit(x, w_slab, b_slab, tb):
    batch, d_in = x.shape
    assert d_in <= LANE, f"input_dim={d_in} exceeds LANE={LANE}"
    grid = (pl.cdiv(batch, tb),)

    flops = 2 * grid[0] * tb * _N_LAYERS * LANE * LANE
    bytes_accessed = (2 * batch * d_in * 4            # activations in + out (true width)
                      + w_slab.size * 2 + b_slab.size * 4)   # resident params

    return pl.pallas_call(
        _autoencoder_kernel,
        out_shape=jax.ShapeDtypeStruct((batch, d_in), x.dtype),
        grid=grid,
        in_specs=[
            # Activation tile at true feature width (last block dim == full array dim).
            pl.BlockSpec((tb, d_in), lambda i: (i, 0)),
            # Weight / bias slabs: constant index_map -> DMA'd once, VMEM-resident.
            pl.BlockSpec((_N_LAYERS, LANE, LANE), lambda i: (0, 0, 0)),
            pl.BlockSpec((_N_LAYERS, 1, LANE), lambda i: (0, 0, 0)),
        ],
        out_specs=pl.BlockSpec((tb, d_in), lambda i: (i, 0)),
        compiler_params=pltpu.CompilerParams(
            dimension_semantics=("parallel",),
            vmem_limit_bytes=32 * 1024 * 1024),
        cost_estimate=pl.CostEstimate(
            flops=flops, transcendentals=0, bytes_accessed=bytes_accessed),
    )(x, w_slab, b_slab)


def autoencoder_forward(x, w_slab, b_slab, *, tb=None):
    """Autoencoder forward. `tb` (batch tile, multiple of 128) is a static sweep knob."""
    if tb is None:
        tb = _pick_tb(x.shape[0])
    return _autoencoder_forward_jit(x, w_slab, b_slab, tb)


def autoencoder_ref(x, params, *, matmul_dtype=jnp.float32):
    """Pure-JAX reference; matmul_dtype=bfloat16 mimics the kernel's MXU input cast."""
    h = x.astype(jnp.float32)
    for (w_t, b), relu in zip(params, _RELU):
        h = jnp.dot(h.astype(matmul_dtype), w_t.astype(matmul_dtype),
                    preferred_element_type=jnp.float32) + b.astype(jnp.float32)
        if relu:
            h = jnp.maximum(h, 0.0)
    return h


if __name__ == "__main__":
    input_dim, latent_dim = 16, 8
    batch = 200        # deliberately not a multiple of the 128-row batch tile

    key = jax.random.PRNGKey(0)
    kx, kp = jax.random.split(key)
    x = jax.random.normal(kx, (batch, input_dim), jnp.float32)
    params = init_params(kp, input_dim, latent_dim)
    w_slab, b_slab = pack_params(params)

    out = autoencoder_forward(x, w_slab, b_slab)
    out = jax.block_until_ready(out)

    ref_bf16 = autoencoder_ref(x, params, matmul_dtype=jnp.bfloat16)
    ref_f32 = autoencoder_ref(x, params, matmul_dtype=jnp.float32)

    assert out.shape == (batch, input_dim), out.shape
    assert jnp.allclose(out, ref_bf16, atol=2e-3, rtol=2e-3), "mismatch vs bf16 reference"
    assert jnp.allclose(out, ref_f32, atol=1e-1, rtol=1e-1), "mismatch vs f32 reference"

    print("KERNEL_OK")
</pallas_src>

<mosaic_0001>
module attributes {stable_mosaic.version = 11 : i64} {
  func.func @_autoencoder_kernel(%arg0: i32, %arg1: memref<128x16xf32, #tpu.memory_space<vmem>>, %arg2: memref<6x128x128xbf16, #tpu.memory_space<vmem>>, %arg3: memref<6x1x128xf32, #tpu.memory_space<vmem>>, %arg4: memref<128x16xf32, #tpu.memory_space<vmem>>) attributes {dimension_semantics = [#tpu.dimension_semantics<parallel>], iteration_bounds = array<i64: 2>, scalar_prefetch = 0 : i64, scratch_operands = 0 : i64, tpu.core_type = #tpu.core_type<tc>, window_params = [{transform_indices = @transform_0, window_bounds = array<i64: 128, 16>}, {pipeline_mode = #tpu.pipeline_mode<synchronous>, transform_indices = @transform_1, window_bounds = array<i64: 6, 128, 128>}, {pipeline_mode = #tpu.pipeline_mode<synchronous>, transform_indices = @transform_2, window_bounds = array<i64: 6, 1, 128>}, {transform_indices = @transform_3, window_bounds = array<i64: 128, 16>}]} {
    %c0 = arith.constant 0 : index
    %c0_0 = arith.constant 0 : index
    %0 = vector.load %arg1[%c0, %c0_0] : memref<128x16xf32, #tpu.memory_space<vmem>>, vector<128x16xf32>
    %cst = arith.constant 0.000000e+00 : f32
    %1 = vector.broadcast %cst : f32 to vector<128x112xf32>
    %2 = tpu.concatenate %0, %1 in 1 : vector<128x16xf32>, vector<128x112xf32> -> vector<128x128xf32>
    %c0_1 = arith.constant 0 : index
    %c0_2 = arith.constant 0 : index
    %c0_3 = arith.constant 0 : index
    %3 = vector.load %arg2[%c0_1, %c0_2, %c0_3] : memref<6x128x128xbf16, #tpu.memory_space<vmem>>, vector<1x128x128xbf16>
    %4 = vector.shape_cast %3 : vector<1x128x128xbf16> to vector<128x128xbf16>
    %c0_4 = arith.constant 0 : index
    %c0_5 = arith.constant 0 : index
    %c0_6 = arith.constant 0 : index
    %5 = vector.load %arg3[%c0_4, %c0_5, %c0_6] : memref<6x1x128xf32, #tpu.memory_space<vmem>>, vector<1x1x128xf32>
    %6 = vector.shape_cast %5 : vector<1x1x128xf32> to vector<1x128xf32>
    %7 = arith.truncf %2 : vector<128x128xf32> to vector<128x128xbf16>
    %cst_7 = arith.constant dense<0.000000e+00> : vector<128x128xf32>
    %8 = tpu.matmul %7, %4, %cst_7 {dimension_numbers = #tpu.dot_dimension_numbers<[1], [0], [0], [1], [0, 0, 1, 1], [], []>} : vector<128x128xbf16>, vector<128x128xbf16>, vector<128x128xf32> -> vector<128x128xf32>
    %9 = vector.broadcast %6 : vector<1x128xf32> to vector<128x128xf32>
    %10 = arith.addf %8, %9 : vector<128x128xf32>
    %cst_8 = arith.constant 0.000000e+00 : f32
    %11 = vector.broadcast %cst_8 : f32 to vector<128x128xf32>
    %12 = arith.maximumf %10, %11 : vector<128x128xf32>
    %c1 = arith.constant 1 : index
    %c0_9 = arith.constant 0 : index
    %c0_10 = arith.constant 0 : index
    %13 = vector.load %arg2[%c1, %c0_9, %c0_10] : memref<6x128x128xbf16, #tpu.memory_space<vmem>>, vector<1x128x128xbf16>
    %14 = vector.shape_cast %13 : vector<1x128x128xbf16> to vector<128x128xbf16>
    %c1_11 = arith.constant 1 : index
    %c0_12 = arith.constant 0 : index
    %c0_13 = arith.constant 0 : index
    %15 = vector.load %arg3[%c1_11, %c0_12, %c0_13] : memref<6x1x128xf32, #tpu.memory_space<vmem>>, vector<1x1x128xf32>
    %16 = vector.shape_cast %15 : vector<1x1x128xf32> to vector<1x128xf32>
    %17 = arith.truncf %12 : vector<128x128xf32> to vector<128x128xbf16>
    %cst_14 = arith.constant dense<0.000000e+00> : vector<128x128xf32>
    %18 = tpu.matmul %17, %14, %cst_14 {dimension_numbers = #tpu.dot_dimension_numbers<[1], [0], [0], [1], [0, 0, 1, 1], [], []>} : vector<128x128xbf16>, vector<128x128xbf16>, vector<128x128xf32> -> vector<128x128xf32>
    %19 = vector.broadcast %16 : vector<1x128xf32> to vector<128x128xf32>
    %20 = arith.addf %18, %19 : vector<128x128xf32>
    %cst_15 = arith.constant 0.000000e+00 : f32
    %21 = vector.broadcast %cst_15 : f32 to vector<128x128xf32>
    %22 = arith.maximumf %20, %21 : vector<128x128xf32>
    %c2 = arith.constant 2 : index
    %c0_16 = arith.constant 0 : index
    %c0_17 = arith.constant 0 : index
    %23 = vector.load %arg2[%c2, %c0_16, %c0_17] : memref<6x128x128xbf16, #tpu.memory_space<vmem>>, vector<1x128x128xbf16>
    %24 = vector.shape_cast %23 : vector<1x128x128xbf16> to vector<128x128xbf16>
    %c2_18 = arith.constant 2 : index
    %c0_19 = arith.constant 0 : index
    %c0_20 = arith.constant 0 : index
    %25 = vector.load %arg3[%c2_18, %c0_19, %c0_20] : memref<6x1x128xf32, #tpu.memory_space<vmem>>, vector<1x1x128xf32>
    %26 = vector.shape_cast %25 : vector<1x1x128xf32> to vector<1x128xf32>
    %27 = arith.truncf %22 : vector<128x128xf32> to vector<128x128xbf16>
    %cst_21 = arith.constant dense<0.000000e+00> : vector<128x128xf32>
    %28 = tpu.matmul %27, %24, %cst_21 {dimension_numbers = #tpu.dot_dimension_numbers<[1], [0], [0], [1], [0, 0, 1, 1], [], []>} : vector<128x128xbf16>, vector<128x128xbf16>, vector<128x128xf32> -> vector<128x128xf32>
    %29 = vector.broadcast %26 : vector<1x128xf32> to vector<128x128xf32>
    %30 = arith.addf %28, %29 : vector<128x128xf32>
    %c3 = arith.constant 3 : index
    %c0_22 = arith.constant 0 : index
    %c0_23 = arith.constant 0 : index
    %31 = vector.load %arg2[%c3, %c0_22, %c0_23] : memref<6x128x128xbf16, #tpu.memory_space<vmem>>, vector<1x128x128xbf16>
    %32 = vector.shape_cast %31 : vector<1x128x128xbf16> to vector<128x128xbf16>
    %c3_24 = arith.constant 3 : index
    %c0_25 = arith.constant 0 : index
    %c0_26 = arith.constant 0 : index
    %33 = vector.load %arg3[%c3_24, %c0_25, %c0_26] : memref<6x1x128xf32, #tpu.memory_space<vmem>>, vector<1x1x128xf32>
    %34 = vector.shape_cast %33 : vector<1x1x128xf32> to vector<1x128xf32>
    %35 = arith.truncf %30 : vector<128x128xf32> to vector<128x128xbf16>
    %cst_27 = arith.constant dense<0.000000e+00> : vector<128x128xf32>
    %36 = tpu.matmul %35, %32, %cst_27 {dimension_numbers = #tpu.dot_dimension_numbers<[1], [0], [0], [1], [0, 0, 1, 1], [], []>} : vector<128x128xbf16>, vector<128x128xbf16>, vector<128x128xf32> -> vector<128x128xf32>
    %37 = vector.broadcast %34 : vector<1x128xf32> to vector<128x128xf32>
    %38 = arith.addf %36, %37 : vector<128x128xf32>
    %cst_28 = arith.constant 0.000000e+00 : f32
    %39 = vector.broadcast %cst_28 : f32 to vector<128x128xf32>
    %40 = arith.maximumf %38, %39 : vector<128x128xf32>
    %c4 = arith.constant 4 : index
    %c0_29 = arith.constant 0 : index
    %c0_30 = arith.constant 0 : index
    %41 = vector.load %arg2[%c4, %c0_29, %c0_30] : memref<6x128x128xbf16, #tpu.memory_space<vmem>>, vector<1x128x128xbf16>
    %42 = vector.shape_cast %41 : vector<1x128x128xbf16> to vector<128x128xbf16>
    %c4_31 = arith.constant 4 : index
    %c0_32 = arith.constant 0 : index
    %c0_33 = arith.constant 0 : index
    %43 = vector.load %arg3[%c4_31, %c0_32, %c0_33] : memref<6x1x128xf32, #tpu.memory_space<vmem>>, vector<1x1x128xf32>
    %44 = vector.shape_cast %43 : vector<1x1x128xf32> to vector<1x128xf32>
    %45 = arith.truncf %40 : vector<128x128xf32> to vector<128x128xbf16>
    %cst_34 = arith.constant dense<0.000000e+00> : vector<128x128xf32>
    %46 = tpu.matmul %45, %42, %cst_34 {dimension_numbers = #tpu.dot_dimension_numbers<[1], [0], [0], [1], [0, 0, 1, 1], [], []>} : vector<128x128xbf16>, vector<128x128xbf16>, vector<128x128xf32> -> vector<128x128xf32>
    %47 = vector.broadcast %44 : vector<1x128xf32> to vector<128x128xf32>
    %48 = arith.addf %46, %47 : vector<128x128xf32>
    %cst_35 = arith.constant 0.000000e+00 : f32
    %49 = vector.broadcast %cst_35 : f32 to vector<128x128xf32>
    %50 = arith.maximumf %48, %49 : vector<128x128xf32>
    %c5 = arith.constant 5 : index
    %c0_36 = arith.constant 0 : index
    %c0_37 = arith.constant 0 : index
    %51 = vector.load %arg2[%c5, %c0_36, %c0_37] : memref<6x128x128xbf16, #tpu.memory_space<vmem>>, vector<1x128x128xbf16>
    %52 = vector.shape_cast %51 : vector<1x128x128xbf16> to vector<128x128xbf16>
    %c5_38 = arith.constant 5 : index
    %c0_39 = arith.constant 0 : index
    %c0_40 = arith.constant 0 : index
    %53 = vector.load %arg3[%c5_38, %c0_39, %c0_40] : memref<6x1x128xf32, #tpu.memory_space<vmem>>, vector<1x1x128xf32>
    %54 = vector.shape_cast %53 : vector<1x1x128xf32> to vector<1x128xf32>
    %55 = arith.truncf %50 : vector<128x128xf32> to vector<128x128xbf16>
    %cst_41 = arith.constant dense<0.000000e+00> : vector<128x128xf32>
    %56 = tpu.matmul %55, %52, %cst_41 {dimension_numbers = #tpu.dot_dimension_numbers<[1], [0], [0], [1], [0, 0, 1, 1], [], []>} : vector<128x128xbf16>, vector<128x128xbf16>, vector<128x128xf32> -> vector<128x128xf32>
    %57 = vector.broadcast %54 : vector<1x128xf32> to vector<128x128xf32>
    %58 = arith.addf %56, %57 : vector<128x128xf32>
    %59 = vector.extract_strided_slice %58 {offsets = [0, 0], sizes = [128, 16], strides = [1, 1]} : vector<128x128xf32> to vector<128x16xf32>
    %c0_42 = arith.constant 0 : index
    %c0_43 = arith.constant 0 : index
    %60 = vector.load %arg4[%c0_42, %c0_43] : memref<128x16xf32, #tpu.memory_space<vmem>>, vector<128x16xf32>
    tpu.vector_store %arg4[%c0_42, %c0_43], %59 {strides = array<i32>} : memref<128x16xf32, #tpu.memory_space<vmem>>, vector<128x16xf32>,
    return
  }
  func.func @transform_0(%arg0: i32) -> (i32, i32) {
    %c0_i32 = arith.constant 0 : i32
    %c0_i32_0 = arith.constant 0 : i32
    return %arg0, %c0_i32 : i32, i32
  }
  func.func @transform_1(%arg0: i32) -> (i32, i32, i32) {
    %c0_i32 = arith.constant 0 : i32
    %c0_i32_0 = arith.constant 0 : i32
    %c0_i32_1 = arith.constant 0 : i32
    %c0_i32_2 = arith.constant 0 : i32
    return %c0_i32, %c0_i32_0, %c0_i32_1 : i32, i32, i32
  }
  func.func @transform_2(%arg0: i32) -> (i32, i32, i32) {
    %c0_i32 = arith.constant 0 : i32
    %c0_i32_0 = arith.constant 0 : i32
    %c0_i32_1 = arith.constant 0 : i32
    %c0_i32_2 = arith.constant 0 : i32
    return %c0_i32, %c0_i32_0, %c0_i32_1 : i32, i32, i32
  }
  func.func @transform_3(%arg0: i32) -> (i32, i32) {
    %c0_i32 = arith.constant 0 : i32
    %c0_i32_0 = arith.constant 0 : i32
    return %arg0, %c0_i32 : i32, i32
  }
}

</mosaic_0001>

<llo_original>
// kernel: _autoencoder_forward_jit.1
$region0: #{_autoencoder_forward_jit.1}
  #allocation0 [shape = 'u32[]', space=smem, size = 0x4, offset = 0x4, fixed_abs, tag = 'smem constant byte address 0x4 - core index']
  #allocation1 [shape = 'u32[144,128]{1,0:T(1,128)}', space=vmem, size = 0x12000, scoped, tag = 'internal scratch']
  %s0 = inlined_call_operand.vmem [shape: f32[200,16], index: 0, kind: input, shape index: {}]
  %s1 = inlined_call_operand.hbm [shape: bf16[6,128,128], index: 1, kind: input, shape index: {}]
  %s2 = inlined_call_operand.vmem [shape: f32[6,1,128], index: 2, kind: input, shape index: {}]
  %s3 = inlined_call_operand.vmem [shape: f32[200,16], index: 3, kind: output, shape index: {}]
  %s4 = sld [smem:[#allocation0]]
  $region97: #{_autoencoder_forward_jit.1} parent=0
    _
  %s6 = ssub.s32 1, %s4
  %s7 = scalar_select 0, %s6, %s4
  $region1: #{_autoencoder_forward_jit.1} parent=0
    #allocation2 [shape = 'u8[196608]{0}', space=vmem, size = 0x30000, scoped, tag = 'input window, operand 1, single buffered']
    #allocation3 [shape = 's32[2]{0}', space=sflag, size = 0x8, scoped, tag = 'scoped memory for _autoencoder_forward_jit.1']
    #allocation4 [shape = 'u8[131072]{0}', space=vmem, size = 0x20000, scoped, tag = 'output window, operand 0']
    %8 = vsyncpa [#allocation3], 0
    loop: start=0, step=1, limit=4
    $region2: #{_autoencoder_forward_jit.1} parent=1 // loop_pre_header
      _
    $region3: #{_autoencoder_forward_jit.1} parent=1 // loop_header
      %s10 = sphi 0, %s14
      %p11 = scmp.ge.s32.totalorder %s10, 4
      %s20 = sphi 0, %s22
      %s23 = sphi 0, %s20
      %s24 = sphi 0, %s23
      %s40 = sphi 0, %s24
      %s44 = sphi 0, %s44
      %s46 = sphi 0, %s44
      %s47 = sphi 0, %s46
      %s61 = sphi 0, %s47
      %s65 = sphi 0, %s65
      %s67 = sphi 0, %s65
      %s68 = sphi 0, %s67
      %s82 = sphi 0, %s68
      %s88 = sphi 0, %s90
      %s91 = sphi 0, %s88
      %s92 = sphi 0, %s91
      %s108 = sphi 0, %s92
    $region4: #{_autoencoder_forward_jit.1} parent=1 // loop_header_branch
      %13 = sbr.rel (%p11) target = $region8
    $region5: #{_autoencoder_forward_jit.1} parent=1 // loop_body
      %s15 = ssub.s32 %s10, 1
      %s16 = ssub.s32 %s10, 2
      %s17 = sadd.s32 %s10, 1
      %s18 = ssub.s32 %s10, %s17
      %p19 = scmp.eq.s32.totalorder %s18, 0
      %s21 = sadd.s32 %s20, 1
      %s22 = scalar_select %p19, %s20, %s21
      %p25 = pneg %p19
      %p26 = scmp.eq.s32.totalorder %s10, 1
      %p27 = por %p25, %p26
      %p28 = scmp.ne.s32.totalorder %s20, %s23
      %p29 = scmp.eq.s32.totalorder %s10, 0
      %p30 = por %p28, %p29
      %p31 = scmp.ne.s32.totalorder %s20, %s23
      %p32 = scmp.eq.s32.totalorder %s15, 1
      %p33 = por %p31, %p32
      %p34 = scmp.ne.s32.totalorder %s23, %s24
      %p35 = scmp.eq.s32.totalorder %s15, 0
      %p36 = por %p34, %p35
      %p37 = scmp.ne.s32.totalorder %s23, %s24
      %p38 = scmp.eq.s32.totalorder %s16, 1
      %p39 = por %p37, %p38
      %p41 = scmp.ne.s32.totalorder %s24, %s40
      %p42 = scmp.eq.s32.totalorder %s16, 0
      %p43 = por %p41, %p42
      %s45 = sadd.s32 %s44, 1
      %p48 = scmp.eq.s32.totalorder %s10, 1
      %p49 = scmp.ne.s32.totalorder %s44, %s46
      %p50 = scmp.eq.s32.totalorder %s10, 0
      %p51 = por %p49, %p50
      %p52 = scmp.ne.s32.totalorder %s44, %s46
      %p53 = scmp.eq.s32.totalorder %s15, 1
      %p54 = por %p52, %p53
      %p55 = scmp.ne.s32.totalorder %s46, %s47
      %p56 = scmp.eq.s32.totalorder %s15, 0
      %p57 = por %p55, %p56
      %p58 = scmp.ne.s32.totalorder %s46, %s47
      %p59 = scmp.eq.s32.totalorder %s16, 1
      %p60 = por %p58, %p59
      %p62 = scmp.ne.s32.totalorder %s47, %s61
      %p63 = scmp.eq.s32.totalorder %s16, 0
      %p64 = por %p62, %p63
      %s66 = sadd.s32 %s65, 1
      %p69 = scmp.eq.s32.totalorder %s10, 1
      %p70 = scmp.ne.s32.totalorder %s65, %s67
      %p71 = scmp.eq.s32.totalorder %s10, 0
      %p72 = por %p70, %p71
      %p73 = scmp.ne.s32.totalorder %s65, %s67
      %p74 = scmp.eq.s32.totalorder %s15, 1
      %p75 = por %p73, %p74
      %p76 = scmp.ne.s32.totalorder %s67, %s68
      %p77 = scmp.eq.s32.totalorder %s15, 0
      %p78 = por %p76, %p77
      %p79 = scmp.ne.s32.totalorder %s67, %s68
      %p80 = scmp.eq.s32.totalorder %s16, 1
      %p81 = por %p79, %p80
      %p83 = scmp.ne.s32.totalorder %s68, %s82
      %p84 = scmp.eq.s32.totalorder %s16, 0
      %p85 = por %p83, %p84
      %s86 = ssub.s32 %s10, %s17
      %p87 = scmp.eq.s32.totalorder %s86, 0
      %s89 = sadd.s32 %s88, 1
      %s90 = scalar_select %p87, %s88, %s89
      %p93 = pneg %p87
      %p94 = scmp.eq.s32.totalorder %s10, 1
      %p95 = por %p93, %p94
      %p96 = scmp.ne.s32.totalorder %s88, %s91
      %p97 = scmp.eq.s32.totalorder %s10, 0
      %p98 = por %p96, %p97
      %p99 = scmp.ne.s32.totalorder %s88, %s91
      %p100 = scmp.eq.s32.totalorder %s15, 1
      %p101 = por %p99, %p100
      %p102 = scmp.ne.s32.totalorder %s91, %s92
      %p103 = scmp.eq.s32.totalorder %s15, 0
      %p104 = por %p102, %p103
      %p105 = scmp.ne.s32.totalorder %s91, %s92
      %p106 = scmp.eq.s32.totalorder %s16, 1
      %p107 = por %p105, %p106
      %p109 = scmp.ne.s32.totalorder %s92, %s108
      %p110 = scmp.eq.s32.totalorder %s16, 0
      %p111 = por %p109, %p110
      %p112 = scmp.le.s32.totalorder 1, %s10
      %p113 = scmp.lt.s32.totalorder %s10, 3
      %p114 = pnand %p112, %p113
      %p115 = pneg %p114
      // Predicated region
      $region9: #{_autoencoder_forward_jit.1} parent=5 // pred_check
        _
      $region10: #{_autoencoder_forward_jit.1} parent=5 // pred_check_branch
        %117 = sbr.rel (%p114) target = $region12
      $region11: #{_autoencoder_forward_jit.1} parent=5 // pred_region
        %s118 = ssub.s32 %s10, 1
        // Predicated region
        $region13: #{_autoencoder_forward_jit.1} parent=11 // pred_check
          %p119 = pneg %p57
        $region14: #{_autoencoder_forward_jit.1} parent=11 // pred_check_branch
          %121 = sbr.rel (%p119) target = $region16
        $region15: #{_autoencoder_forward_jit.1} parent=11 // pred_region
          %s123 = ssub.s32 6144, 6144
          %124 = vsyncadd [#allocation3], %s123
          %s125 = sshll.u32 [#allocation2], 4
          %s126 = int_to_ptr.vmem [resolvable:$true] %s125
          %131 = dma.hbm_to_vmem [thread:$0]  %s1, 6144, %s126, [#allocation3], 64, 64, 4
        $region16: #{_autoencoder_forward_jit.1} parent=11 // pred_fallthru
          _
        // Predicated region
        $region17: #{_autoencoder_forward_jit.1} parent=11 // pred_check
          %p132 = pneg %p78
        $region18: #{_autoencoder_forward_jit.1} parent=11 // pred_check_branch
          %134 = sbr.rel (%p132) target = $region20
        $region19: #{_autoencoder_forward_jit.1} parent=11 // pred_region
          _
        $region20: #{_autoencoder_forward_jit.1} parent=11 // pred_fallthru
          _
      $region12: #{_autoencoder_forward_jit.1} parent=5 // pred_fallthru
        _
      %p135 = scmp.lt.s32.totalorder %s10, 2
      // Predicated region
      $region21: #{_autoencoder_forward_jit.1} parent=5 // pred_check
        %p136 = pneg %p135
      $region22: #{_autoencoder_forward_jit.1} parent=5 // pred_check_branch
        %138 = sbr.rel (%p136) target = $region24
      $region23: #{_autoencoder_forward_jit.1} parent=5 // pred_region
        // Predicated region
        $region25: #{_autoencoder_forward_jit.1} parent=23 // pred_check
          %p139 = pneg %p30
        $region26: #{_autoencoder_forward_jit.1} parent=23 // pred_check_branch
          %141 = sbr.rel (%p139) target = $region28
        $region27: #{_autoencoder_forward_jit.1} parent=23 // pred_region
          %s142 = smul.u32 16, %s10
          %s143 = ssub.s32 25, %s142
          %p144 = scmp.lt.s32.totalorder %s143, 16
          %s145 = scalar_select %p144, %s143, 16
          %s146 = smul.u32 128, %s145
          %p147 = scmp.lt.s32.totalorder %s142, 24
          %s148 = scalar_select %p147, %s142, 24
          %s149 = smul.addr %s148, 8
          %s150 = scalar_lea.vmem %s0, %s149
          %s151 = smul.u32 16, %s10
          %s152 = ssub.s32 25, %s151
          %p153 = scmp.lt.s32.totalorder %s152, 16
          %s154 = scalar_select %p153, %s152, 16
          %s155 = smul.u32 128, %s154
        $region28: #{_autoencoder_forward_jit.1} parent=23 // pred_fallthru
          _
      $region24: #{_autoencoder_forward_jit.1} parent=5 // pred_fallthru
        _
      %p156 = scmp.le.s32.totalorder 1, %s10
      %p157 = scmp.lt.s32.totalorder %s10, 3
      %p158 = pnand %p156, %p157
      %p159 = pneg %p158
      // Predicated region
      $region29: #{_autoencoder_forward_jit.1} parent=5 // pred_check
        _
      $region30: #{_autoencoder_forward_jit.1} parent=5 // pred_check_branch
        %161 = sbr.rel (%p158) target = $region32
      $region31: #{_autoencoder_forward_jit.1} parent=5 // pred_region
        %s162 = ssub.s32 %s10, 1
        // Predicated region
        $region33: #{_autoencoder_forward_jit.1} parent=31 // pred_check
          %p163 = pneg %p57
        $region34: #{_autoencoder_forward_jit.1} parent=31 // pred_check_branch
          %165 = sbr.rel (%p163) target = $region36
        $region35: #{_autoencoder_forward_jit.1} parent=31 // pred_region
          %166 = dma.done [#allocation3], 6144
        $region36: #{_autoencoder_forward_jit.1} parent=31 // pred_fallthru
          _
        %s167 = smul.u32 16, %s15
        %s168 = ssub.s32 25, %s167
        %p169 = scmp.lt.s32.totalorder %s168, 16
        %s170 = scalar_select %p169, %s168, 16
        %s171 = smul.u32 128, %s170
        %p172 = scmp.lt.s32.totalorder %s167, 24
        %s173 = scalar_select %p172, %s167, 24
        %s174 = smul.addr %s173, 8
        %s175 = scalar_lea.vmem %s0, %s174
        %p176 = pneg %p36
        %p177 = pneg %p33
        %p178 = pneg %p57
        %p179 = pneg %p54
        %p180 = pneg %p78
        %p181 = pneg %p75
        %p182 = pneg %p104
        %p183 = pneg %p101
        %s184 = sand.u32 %s91, 1
        %s185 = sand.u32 %s91, 1
        %s186 = smul.addr %s185, 128
        %s187 = scalar_lea.vmem [#allocation4], %s186
        %s188 = smul.u32 16, %s15
        %s189 = ssub.s32 25, %s188
        %p190 = scmp.lt.s32.totalorder %s189, 16
        %s191 = scalar_select %p190, %s189, 16
        %s192 = smul.u32 128, %s191
        %p193 = scmp.lt.s32.totalorder %s188, 24
        %s194 = scalar_select %p193, %s188, 24
        %s195 = smul.addr %s194, 8
        %s196 = scalar_lea.vmem %s0, %s195
        %s197 = smul.u32 16, %s15
        %s198 = ssub.s32 25, %s197
        %p199 = scmp.lt.s32.totalorder %s198, 16
        %s200 = scalar_select %p199, %s198, 16
        %s201 = smul.u32 128, %s200
        %s202 = smul.u32 16, %s15
        %s203 = ssub.s32 25, %s202
        %p204 = scmp.lt.s32.totalorder %s203, 16
        %s205 = scalar_select %p204, %s203, 16
        %s206 = smul.u32 128, %s205
        %v208 = vld [vmem:[%s196] sm:$0xff]
        %v209 = vld [vmem:[%s196 + $0x8] sm:$0xff]
        %v210 = vld [vmem:[%s196 + $0x10] sm:$0xff]
        %v211 = vld [vmem:[%s196 + $0x18] sm:$0xff]
        %v212 = vld [vmem:[%s196 + $0x20] sm:$0xff]
        %v213 = vld [vmem:[%s196 + $0x28] sm:$0xff]
        %v214 = vld [vmem:[%s196 + $0x30] sm:$0xff]
        %v215 = vld [vmem:[%s196 + $0x38] sm:$0xff]
        %v216 = vld [vmem:[%s196 + $0x40] sm:$0xff]
        %v217 = vld [vmem:[%s196 + $0x48] sm:$0xff]
        %v218 = vld [vmem:[%s196 + $0x50] sm:$0xff]
        %v219 = vld [vmem:[%s196 + $0x58] sm:$0xff]
        %v220 = vld [vmem:[%s196 + $0x60] sm:$0xff]
        %v221 = vld [vmem:[%s196 + $0x68] sm:$0xff]
        %v222 = vld [vmem:[%s196 + $0x70] sm:$0xff]
        %v223 = vld [vmem:[%s196 + $0x78] sm:$0xff]
        %vm224 = vcmask 130048
        %v225 = vsel %vm224, %v208, 0.0
        %v226 = vsel %vm224, %v209, 0.0
        %v227 = vsel %vm224, %v210, 0.0
        %v228 = vsel %vm224, %v211, 0.0
        %v229 = vsel %vm224, %v212, 0.0
        %v230 = vsel %vm224, %v213, 0.0
        %v231 = vsel %vm224, %v214, 0.0
        %v232 = vsel %vm224, %v215, 0.0
        %v233 = vsel %vm224, %v216, 0.0
        %v234 = vsel %vm224, %v217, 0.0
        %v235 = vsel %vm224, %v218, 0.0
        %v236 = vsel %vm224, %v219, 0.0
        %v237 = vsel %vm224, %v220, 0.0
        %v238 = vsel %vm224, %v221, 0.0
        %v239 = vsel %vm224, %v222, 0.0
        %v240 = vsel %vm224, %v223, 0.0
        %v241 = vld [vmem:[#allocation2] sm:$0xf]
        %v242 = vld [vmem:[#allocation2 + $0x4] sm:$0xf]
        %v243 = vld [vmem:[#allocation2 + $0x8] sm:$0xf]
        %v244 = vld [vmem:[#allocation2 + $0xc] sm:$0xf]
        %v245 = vld [vmem:[#allocation2 + $0x10] sm:$0xf]
        %v246 = vld [vmem:[#allocation2 + $0x14] sm:$0xf]
        %v247 = vld [vmem:[#allocation2 + $0x18] sm:$0xf]
        %v248 = vld [vmem:[#allocation2 + $0x1c] sm:$0xf]
        %v249 = vld [vmem:[#allocation2 + $0x20] sm:$0xf]
        %v250 = vld [vmem:[#allocation2 + $0x24] sm:$0xf]
        %v251 = vld [vmem:[#allocation2 + $0x28] sm:$0xf]
        %v252 = vld [vmem:[#allocation2 + $0x2c] sm:$0xf]
        %v253 = vld [vmem:[#allocation2 + $0x30] sm:$0xf]
        %v254 = vld [vmem:[#allocation2 + $0x34] sm:$0xf]
        %v255 = vld [vmem:[#allocation2 + $0x38] sm:$0xf]
        %v256 = vld [vmem:[#allocation2 + $0x3c] sm:$0xf]
        %v257 = vld [vmem:[%s2] sm:$0x1]
        %v258 = vpack.c.bf16 %v226, %v225
        %v259 = vpack.c.bf16 %v228, %v227
        %v260 = vpack.c.bf16 %v230, %v229
        %v261 = vpack.c.bf16 %v232, %v231
        %v262 = vpack.c.bf16 %v234, %v233
        %v263 = vpack.c.bf16 %v236, %v235
        %v264 = vpack.c.bf16 %v238, %v237
        %v265 = vpack.c.bf16 %v240, %v239
        %v267 = vlaneseq
        %v268 = vshrl.u32 %v267, 7
        %v269 = vsub.s32 0, %v268
        %v270 = vrot.slane %v257, %v269
        %v288 = vunpack.c.l.b16 %v241
        %v289 = vunpack.c.l.b16 %v242
        %v290 = vunpack.c.l.b16 %v243
        %v291 = vunpack.c.l.b16 %v244
        %v292 = vunpack.c.l.b16 %v245
        %v293 = vunpack.c.l.b16 %v246
        %v294 = vunpack.c.l.b16 %v247
        %v295 = vunpack.c.l.b16 %v248
        %v296 = vunpack.c.l.b16 %v249
        %v297 = vunpack.c.l.b16 %v250
        %v298 = vunpack.c.l.b16 %v251
        %v299 = vunpack.c.l.b16 %v252
        %v300 = vunpack.c.l.b16 %v253
        %v301 = vunpack.c.l.b16 %v254
        %v302 = vunpack.c.l.b16 %v255
        %v303 = vunpack.c.l.b16 %v256
        %v304 = vpack.c.b16 %v289, %v288
        %v305 = vpack.c.b16 %v291, %v290
        %v306 = vpack.c.b16 %v293, %v292
        %v307 = vpack.c.b16 %v295, %v294
        %v308 = vpack.c.b16 %v297, %v296
        %v309 = vpack.c.b16 %v299, %v298
        %v310 = vpack.c.b16 %v301, %v300
        %v311 = vpack.c.b16 %v303, %v302
        %320 = vmatprep.subr.bf16.mxu0 0
        %321 = vmatpush1.bf16.msra.mxu0 %v304
        %322 = vmatprep.subr.bf16.mxu0 0
        %323 = vmatpush1.bf16.msra.mxu0 %v305
        %324 = vmatprep.subr.bf16.mxu0 0
        %325 = vmatpush1.bf16.msra.mxu0 %v306
        %326 = vmatprep.subr.bf16.mxu0 0
        %327 = vmatpush1.bf16.msra.mxu0 %v307
        %328 = vmatprep.subr.bf16.mxu0 0
        %329 = vmatpush1.bf16.msra.mxu0 %v308
        %330 = vmatprep.subr.bf16.mxu0 0
        %331 = vmatpush1.bf16.msra.mxu0 %v309
        %332 = vmatprep.subr.bf16.mxu0 0
        %333 = vmatpush1.bf16.msra.mxu0 %v310
        %334 = vmatprep.subr.bf16.mxu0 0
        %335 = vmatpush1.bf16.msra.mxu0 %v311
        %336 = vmatprep.subr.bf16.mxu0 0
        %337 = vmatpush1.bf16.msra.mxu0 0
        %338 = vmatprep.subr.bf16.mxu0 0
        %339 = vmatpush1.bf16.msra.mxu0 0
        %340 = vmatprep.subr.bf16.mxu0 0
        %341 = vmatpush1.bf16.msra.mxu0 0
        %342 = vmatprep.subr.bf16.mxu0 0
        %343 = vmatpush1.bf16.msra.mxu0 0
        %344 = vmatprep.subr.bf16.mxu0 0
        %345 = vmatpush1.bf16.msra.mxu0 0
        %346 = vmatprep.subr.bf16.mxu0 0
        %347 = vmatpush1.bf16.msra.mxu0 0
        %348 = vmatprep.subr.bf16.mxu0 0
        %349 = vmatpush1.bf16.msra.mxu0 0
        %350 = vmatprep.subr.bf16.mxu0 0
        %351 = vmatpush1.bf16.msra.mxu0 0
        %352 = vmatprep.mubr.bf16.mxu0 0
        %353 = vmatmul.mubr.bf16.gmra.mrb[0].mxu0 %v258
        %v354 = vpop.f32.mrb[0].mxu0
        %v355 = vadd.f32 %v270, %v354
        %v356 = vpop.f32.mrb[0].mxu0
        %v357 = vpop.f32.mrb[0].mxu0
        %v358 = vadd.f32 %v270, %v357
        %v359 = vpop.f32.mrb[0].mxu0
        %360 = vmatprep.mubr.bf16.mxu0 0
        %361 = vmatmul.mubr.bf16.gmra.mrb[0].mxu0 %v259
        %v362 = vpop.f32.mrb[0].mxu0
        %v363 = vadd.f32 %v270, %v362
        %v364 = vpop.f32.mrb[0].mxu0
        %v365 = vpop.f32.mrb[0].mxu0
        %v366 = vadd.f32 %v270, %v365
        %v367 = vpop.f32.mrb[0].mxu0
        %368 = vmatprep.mubr.bf16.mxu0 0
        %369 = vmatmul.mubr.bf16.gmra.mrb[0].mxu0 %v260
        %v370 = vpop.f32.mrb[0].mxu0
        %v371 = vadd.f32 %v270, %v370
        %v372 = vpop.f32.mrb[0].mxu0
        %v373 = vpop.f32.mrb[0].mxu0
        %v374 = vadd.f32 %v270, %v373
        %v375 = vpop.f32.mrb[0].mxu0
        %376 = vmatprep.mubr.bf16.mxu0 0
        %377 = vmatmul.mubr.bf16.gmra.mrb[0].mxu0 %v261
        %v378 = vpop.f32.mrb[0].mxu0
        %v379 = vadd.f32 %v270, %v378
        %v380 = vpop.f32.mrb[0].mxu0
        %v381 = vpop.f32.mrb[0].mxu0
        %v382 = vadd.f32 %v270, %v381
        %v383 = vpop.f32.mrb[0].mxu0
        %384 = vmatprep.mubr.bf16.mxu0 0
        %385 = vmatmul.mubr.bf16.gmra.mrb[0].mxu0 %v262
        %v386 = vpop.f32.mrb[0].mxu0
        %v387 = vadd.f32 %v270, %v386
        %v388 = vpop.f32.mrb[0].mxu0
        %v389 = vpop.f32.mrb[0].mxu0
        %v390 = vadd.f32 %v270, %v389
        %v391 = vpop.f32.mrb[0].mxu0
        %392 = vmatprep.mubr.bf16.mxu0 0
        %393 = vmatmul.mubr.bf16.gmra.mrb[0].mxu0 %v263
        %v394 = vpop.f32.mrb[0].mxu0
        %v395 = vadd.f32 %v270, %v394
        %v396 = vpop.f32.mrb[0].mxu0
        %v397 = vpop.f32.mrb[0].mxu0
        %v398 = vadd.f32 %v270, %v397
        %v399 = vpop.f32.mrb[0].mxu0
        %400 = vmatprep.mubr.bf16.mxu0 0
        %401 = vmatmul.mubr.bf16.gmra.mrb[0].mxu0 %v264
        %v402 = vpop.f32.mrb[0].mxu0
        %v403 = vadd.f32 %v270, %v402
        %v404 = vpop.f32.mrb[0].mxu0
        %v405 = vpop.f32.mrb[0].mxu0
        %v406 = vadd.f32 %v270, %v405
        %v407 = vpop.f32.mrb[0].mxu0
        %408 = vmatprep.mubr.bf16.mxu0 0
        %409 = vmatmul.mubr.bf16.gmra.mrb[0].mxu0 %v265
        %v410 = vpop.f32.mrb[0].mxu0
        %v411 = vadd.f32 %v270, %v410
        %v412 = vpop.f32.mrb[0].mxu0
        %v413 = vpop.f32.mrb[0].mxu0
        %v414 = vadd.f32 %v270, %v413
        %v415 = vpop.f32.mrb[0].mxu0
        %416 = vdwg.mxu0
        %v417 = vmax.f32 %v355, 0.0
        %v418 = vmax.f32 %v358, 0.0
        %v419 = vmax.f32 %v363, 0.0
        %v420 = vmax.f32 %v366, 0.0
        %v421 = vmax.f32 %v371, 0.0
        %v422 = vmax.f32 %v374, 0.0
        %v423 = vmax.f32 %v379, 0.0
        %v424 = vmax.f32 %v382, 0.0
        %v425 = vmax.f32 %v387, 0.0
        %v426 = vmax.f32 %v390, 0.0
        %v427 = vmax.f32 %v395, 0.0
        %v428 = vmax.f32 %v398, 0.0
        %v429 = vmax.f32 %v403, 0.0
        %v430 = vmax.f32 %v406, 0.0
        %v431 = vmax.f32 %v411, 0.0
        %v432 = vmax.f32 %v414, 0.0
        %s433 = scalar_lea.vmem [#allocation2], 64
        %v434 = vld [vmem:[%s433] sm:$0xf]
        %v435 = vld [vmem:[%s433 + $0x4] sm:$0xf]
        %v436 = vld [vmem:[%s433 + $0x8] sm:$0xf]
        %v437 = vld [vmem:[%s433 + $0xc] sm:$0xf]
        %v438 = vld [vmem:[%s433 + $0x10] sm:$0xf]
        %v439 = vld [vmem:[%s433 + $0x14] sm:$0xf]
        %v440 = vld [vmem:[%s433 + $0x18] sm:$0xf]
        %v441 = vld [vmem:[%s433 + $0x1c] sm:$0xf]
        %v442 = vld [vmem:[%s433 + $0x20] sm:$0xf]
        %v443 = vld [vmem:[%s433 + $0x24] sm:$0xf]
        %v444 = vld [vmem:[%s433 + $0x28] sm:$0xf]
        %v445 = vld [vmem:[%s433 + $0x2c] sm:$0xf]
        %v446 = vld [vmem:[%s433 + $0x30] sm:$0xf]
        %v447 = vld [vmem:[%s433 + $0x34] sm:$0xf]
        %v448 = vld [vmem:[%s433 + $0x38] sm:$0xf]
        %v449 = vld [vmem:[%s433 + $0x3c] sm:$0xf]
        %s450 = scalar_lea.vmem %s2, 1
        %v451 = vld [vmem:[%s450] sm:$0x1]
        %v452 = vpack.c.bf16 %v418, %v417
        %v453 = vpack.c.bf16 %v420, %v419
        %v454 = vpack.c.bf16 %v422, %v421
        %v455 = vpack.c.bf16 %v424, %v423
        %v456 = vpack.c.bf16 %v426, %v425
        %v457 = vpack.c.bf16 %v428, %v427
        %v458 = vpack.c.bf16 %v430, %v429
        %v459 = vpack.c.bf16 %v432, %v431
        %v461 = vlaneseq
        %v462 = vshrl.u32 %v461, 7
        %v463 = vsub.s32 0, %v462
        %v464 = vrot.slane %v451, %v463
        %v482 = vunpack.c.l.b16 %v434
        %v483 = vunpack.c.l.b16 %v435
        %v484 = vunpack.c.l.b16 %v436
        %v485 = vunpack.c.l.b16 %v437
        %v486 = vunpack.c.l.b16 %v438
        %v487 = vunpack.c.l.b16 %v439
        %v488 = vunpack.c.l.b16 %v440
        %v489 = vunpack.c.l.b16 %v441
        %v490 = vunpack.c.l.b16 %v442
        %v491 = vunpack.c.l.b16 %v443
        %v492 = vunpack.c.l.b16 %v444
        %v493 = vunpack.c.l.b16 %v445
        %v494 = vunpack.c.l.b16 %v446
        %v495 = vunpack.c.l.b16 %v447
        %v496 = vunpack.c.l.b16 %v448
        %v497 = vunpack.c.l.b16 %v449
        %v498 = vpack.c.b16 %v483, %v482
        %v499 = vpack.c.b16 %v485, %v484
        %v500 = vpack.c.b16 %v487, %v486
        %v501 = vpack.c.b16 %v489, %v488
        %v502 = vpack.c.b16 %v491, %v490
        %v503 = vpack.c.b16 %v493, %v492
        %v504 = vpack.c.b16 %v495, %v494
        %v505 = vpack.c.b16 %v497, %v496
        %514 = vmatprep.subr.bf16.mxu0 0
        %515 = vmatpush1.bf16.msra.mxu0 %v498
        %516 = vmatprep.subr.bf16.mxu0 0
        %517 = vmatpush1.bf16.msra.mxu0 %v499
        %518 = vmatprep.subr.bf16.mxu0 0
        %519 = vmatpush1.bf16.msra.mxu0 %v500
        %520 = vmatprep.subr.bf16.mxu0 0
        %521 = vmatpush1.bf16.msra.mxu0 %v501
        %522 = vmatprep.subr.bf16.mxu0 0
        %523 = vmatpush1.bf16.msra.mxu0 %v502
        %524 = vmatprep.subr.bf16.mxu0 0
        %525 = vmatpush1.bf16.msra.mxu0 %v503
        %526 = vmatprep.subr.bf16.mxu0 0
        %527 = vmatpush1.bf16.msra.mxu0 %v504
        %528 = vmatprep.subr.bf16.mxu0 0
        %529 = vmatpush1.bf16.msra.mxu0 %v505
        %530 = vmatprep.subr.bf16.mxu0 0
        %531 = vmatpush1.bf16.msra.mxu0 0
        %532 = vmatprep.subr.bf16.mxu0 0
        %533 = vmatpush1.bf16.msra.mxu0 0
        %534 = vmatprep.subr.bf16.mxu0 0
        %535 = vmatpush1.bf16.msra.mxu0 0
        %536 = vmatprep.subr.bf16.mxu0 0
        %537 = vmatpush1.bf16.msra.mxu0 0
        %538 = vmatprep.subr.bf16.mxu0 0
        %539 = vmatpush1.bf16.msra.mxu0 0
        %540 = vmatprep.subr.bf16.mxu0 0
        %541 = vmatpush1.bf16.msra.mxu0 0
        %542 = vmatprep.subr.bf16.mxu0 0
        %543 = vmatpush1.bf16.msra.mxu0 0
        %544 = vmatprep.subr.bf16.mxu0 0
        %545 = vmatpush1.bf16.msra.mxu0 0
        %546 = vmatprep.mubr.bf16.mxu0 0
        %547 = vmatmul.mubr.bf16.gmra.mrb[0].mxu0 %v452
        %v548 = vpop.f32.mrb[0].mxu0
        %v549 = vadd.f32 %v464, %v548
        %v550 = vpop.f32.mrb[0].mxu0
        %v551 = vpop.f32.mrb[0].mxu0
        %v552 = vadd.f32 %v464, %v551
        %v553 = vpop.f32.mrb[0].mxu0
        %554 = vmatprep.mubr.bf16.mxu0 0
        %555 = vmatmul.mubr.bf16.gmra.mrb[0].mxu0 %v453
        %v556 = vpop.f32.mrb[0].mxu0
        %v557 = vadd.f32 %v464, %v556
        %v558 = vpop.f32.mrb[0].mxu0
        %v559 = vpop.f32.mrb[0].mxu0
        %v560 = vadd.f32 %v464, %v559
        %v561 = vpop.f32.mrb[0].mxu0
        %562 = vmatprep.mubr.bf16.mxu0 0
        %563 = vmatmul.mubr.bf16.gmra.mrb[0].mxu0 %v454
        %v564 = vpop.f32.mrb[0].mxu0
        %v565 = vadd.f32 %v464, %v564
        %v566 = vpop.f32.mrb[0].mxu0
        %v567 = vpop.f32.mrb[0].mxu0
        %v568 = vadd.f32 %v464, %v567
        %v569 = vpop.f32.mrb[0].mxu0
        %570 = vmatprep.mubr.bf16.mxu0 0
        %571 = vmatmul.mubr.bf16.gmra.mrb[0].mxu0 %v455
        %v572 = vpop.f32.mrb[0].mxu0
        %v573 = vadd.f32 %v464, %v572
        %v574 = vpop.f32.mrb[0].mxu0
        %v575 = vpop.f32.mrb[0].mxu0
        %v576 = vadd.f32 %v464, %v575
        %v577 = vpop.f32.mrb[0].mxu0
        %578 = vmatprep.mubr.bf16.mxu0 0
        %579 = vmatmul.mubr.bf16.gmra.mrb[0].mxu0 %v456
        %v580 = vpop.f32.mrb[0].mxu0
        %v581 = vadd.f32 %v464, %v580
        %v582 = vpop.f32.mrb[0].mxu0
        %v583 = vpop.f32.mrb[0].mxu0
        %v584 = vadd.f32 %v464, %v583
        %v585 = vpop.f32.mrb[0].mxu0
        %586 = vmatprep.mubr.bf16.mxu0 0
        %587 = vmatmul.mubr.bf16.gmra.mrb[0].mxu0 %v457
        %v588 = vpop.f32.mrb[0].mxu0
        %v589 = vadd.f32 %v464, %v588
        %v590 = vpop.f32.mrb[0].mxu0
        %v591 = vpop.f32.mrb[0].mxu0
        %v592 = vadd.f32 %v464, %v591
        %v593 = vpop.f32.mrb[0].mxu0
        %594 = vmatprep.mubr.bf16.mxu0 0
        %595 = vmatmul.mubr.bf16.gmra.mrb[0].mxu0 %v458
        %v596 = vpop.f32.mrb[0].mxu0
        %v597 = vadd.f32 %v464, %v596
        %v598 = vpop.f32.mrb[0].mxu0
        %v599 = vpop.f32.mrb[0].mxu0
        %v600 = vadd.f32 %v464, %v599
        %v601 = vpop.f32.mrb[0].mxu0
        %602 = vmatprep.mubr.bf16.mxu0 0
        %603 = vmatmul.mubr.bf16.gmra.mrb[0].mxu0 %v459
        %v604 = vpop.f32.mrb[0].mxu0
        %v605 = vadd.f32 %v464, %v604
        %v606 = vpop.f32.mrb[0].mxu0
        %v607 = vpop.f32.mrb[0].mxu0
        %v608 = vadd.f32 %v464, %v607
        %v609 = vpop.f32.mrb[0].mxu0
        %610 = vdwg.mxu0
        %v611 = vmax.f32 %v549, 0.0
        %v612 = vmax.f32 %v552, 0.0
        %v613 = vmax.f32 %v557, 0.0
        %v614 = vmax.f32 %v560, 0.0
        %v615 = vmax.f32 %v565, 0.0
        %v616 = vmax.f32 %v568, 0.0
        %v617 = vmax.f32 %v573, 0.0
        %v618 = vmax.f32 %v576, 0.0
        %v619 = vmax.f32 %v581, 0.0
        %v620 = vmax.f32 %v584, 0.0
        %v621 = vmax.f32 %v589, 0.0
        %v622 = vmax.f32 %v592, 0.0
        %v623 = vmax.f32 %v597, 0.0
        %v624 = vmax.f32 %v600, 0.0
        %v625 = vmax.f32 %v605, 0.0
        %v626 = vmax.f32 %v608, 0.0
        %s627 = scalar_lea.vmem [#allocation2], 128
        %v628 = vld [vmem:[%s627] sm:$0xf]
        %v629 = vld [vmem:[%s627 + $0x4] sm:$0xf]
        %v630 = vld [vmem:[%s627 + $0x8] sm:$0xf]
        %v631 = vld [vmem:[%s627 + $0xc] sm:$0xf]
        %v632 = vld [vmem:[%s627 + $0x10] sm:$0xf]
        %v633 = vld [vmem:[%s627 + $0x14] sm:$0xf]
        %v634 = vld [vmem:[%s627 + $0x18] sm:$0xf]
        %v635 = vld [vmem:[%s627 + $0x1c] sm:$0xf]
        %v636 = vld [vmem:[%s627 + $0x20] sm:$0xf]
        %v637 = vld [vmem:[%s627 + $0x24] sm:$0xf]
        %v638 = vld [vmem:[%s627 + $0x28] sm:$0xf]
        %v639 = vld [vmem:[%s627 + $0x2c] sm:$0xf]
        %v640 = vld [vmem:[%s627 + $0x30] sm:$0xf]
        %v641 = vld [vmem:[%s627 + $0x34] sm:$0xf]
        %v642 = vld [vmem:[%s627 + $0x38] sm:$0xf]
        %v643 = vld [vmem:[%s627 + $0x3c] sm:$0xf]
        %s644 = scalar_lea.vmem %s2, 2
        %v645 = vld [vmem:[%s644] sm:$0x1]
        %v646 = vpack.c.bf16 %v612, %v611
        %v647 = vpack.c.bf16 %v614, %v613
        %v648 = vpack.c.bf16 %v616, %v615
        %v649 = vpack.c.bf16 %v618, %v617
        %v650 = vpack.c.bf16 %v620, %v619
        %v651 = vpack.c.bf16 %v622, %v621
        %v652 = vpack.c.bf16 %v624, %v623
        %v653 = vpack.c.bf16 %v626, %v625
        %v655 = vlaneseq
        %v656 = vshrl.u32 %v655, 7
        %v657 = vsub.s32 0, %v656
        %v658 = vrot.slane %v645, %v657
        %v676 = vunpack.c.l.b16 %v628
        %v677 = vunpack.c.l.b16 %v629
        %v678 = vunpack.c.l.b16 %v630
        %v679 = vunpack.c.l.b16 %v631
        %v680 = vunpack.c.l.b16 %v632
        %v681 = vunpack.c.l.b16 %v633
        %v682 = vunpack.c.l.b16 %v634
        %v683 = vunpack.c.l.b16 %v635
        %v684 = vunpack.c.l.b16 %v636
        %v685 = vunpack.c.l.b16 %v637
        %v686 = vunpack.c.l.b16 %v638
        %v687 = vunpack.c.l.b16 %v639
        %v688 = vunpack.c.l.b16 %v640
        %v689 = vunpack.c.l.b16 %v641
        %v690 = vunpack.c.l.b16 %v642
        %v691 = vunpack.c.l.b16 %v643
        %v692 = vpack.c.b16 %v677, %v676
        %v693 = vpack.c.b16 %v679, %v678
        %v694 = vpack.c.b16 %v681, %v680
        %v695 = vpack.c.b16 %v683, %v682
        %v696 = vpack.c.b16 %v685, %v684
        %v697 = vpack.c.b16 %v687, %v686
        %v698 = vpack.c.b16 %v689, %v688
        %v699 = vpack.c.b16 %v691, %v690
        %708 = vmatprep.subr.bf16.mxu0 0
        %709 = vmatpush1.bf16.msra.mxu0 %v692
        %710 = vmatprep.subr.bf16.mxu0 0
        %711 = vmatpush1.bf16.msra.mxu0 %v693
        %712 = vmatprep.subr.bf16.mxu0 0
        %713 = vmatpush1.bf16.msra.mxu0 %v694
        %714 = vmatprep.subr.bf16.mxu0 0
        %715 = vmatpush1.bf16.msra.mxu0 %v695
        %716 = vmatprep.subr.bf16.mxu0 0
        %717 = vmatpush1.bf16.msra.mxu0 %v696
        %718 = vmatprep.subr.bf16.mxu0 0
        %719 = vmatpush1.bf16.msra.mxu0 %v697
        %720 = vmatprep.subr.bf16.mxu0 0
        %721 = vmatpush1.bf16.msra.mxu0 %v698
        %722 = vmatprep.subr.bf16.mxu0 0
        %723 = vmatpush1.bf16.msra.mxu0 %v699
        %724 = vmatprep.subr.bf16.mxu0 0
        %725 = vmatpush1.bf16.msra.mxu0 0
        %726 = vmatprep.subr.bf16.mxu0 0
        %727 = vmatpush1.bf16.msra.mxu0 0
        %728 = vmatprep.subr.bf16.mxu0 0
        %729 = vmatpush1.bf16.msra.mxu0 0
        %730 = vmatprep.subr.bf16.mxu0 0
        %731 = vmatpush1.bf16.msra.mxu0 0
        %732 = vmatprep.subr.bf16.mxu0 0
        %733 = vmatpush1.bf16.msra.mxu0 0
        %734 = vmatprep.subr.bf16.mxu0 0
        %735 = vmatpush1.bf16.msra.mxu0 0
        %736 = vmatprep.subr.bf16.mxu0 0
        %737 = vmatpush1.bf16.msra.mxu0 0
        %738 = vmatprep.subr.bf16.mxu0 0
        %739 = vmatpush1.bf16.msra.mxu0 0
        %740 = vmatprep.mubr.bf16.mxu0 0
        %741 = vmatmul.mubr.bf16.gmra.mrb[0].mxu0 %v646
        %v742 = vpop.f32.mrb[0].mxu0
        %v743 = vadd.f32 %v658, %v742
        %v744 = vpop.f32.mrb[0].mxu0
        %v745 = vpop.f32.mrb[0].mxu0
        %v746 = vadd.f32 %v658, %v745
        %v747 = vpop.f32.mrb[0].mxu0
        %748 = vmatprep.mubr.bf16.mxu0 0
        %749 = vmatmul.mubr.bf16.gmra.mrb[0].mxu0 %v647
        %v750 = vpop.f32.mrb[0].mxu0
        %v751 = vadd.f32 %v658, %v750
        %v752 = vpop.f32.mrb[0].mxu0
        %v753 = vpop.f32.mrb[0].mxu0
        %v754 = vadd.f32 %v658, %v753
        %v755 = vpop.f32.mrb[0].mxu0
        %756 = vmatprep.mubr.bf16.mxu0 0
        %757 = vmatmul.mubr.bf16.gmra.mrb[0].mxu0 %v648
        %v758 = vpop.f32.mrb[0].mxu0
        %v759 = vadd.f32 %v658, %v758
        %v760 = vpop.f32.mrb[0].mxu0
        %v761 = vpop.f32.mrb[0].mxu0
        %v762 = vadd.f32 %v658, %v761
        %v763 = vpop.f32.mrb[0].mxu0
        %764 = vmatprep.mubr.bf16.mxu0 0
        %765 = vmatmul.mubr.bf16.gmra.mrb[0].mxu0 %v649
        %v766 = vpop.f32.mrb[0].mxu0
        %v767 = vadd.f32 %v658, %v766
        %v768 = vpop.f32.mrb[0].mxu0
        %v769 = vpop.f32.mrb[0].mxu0
        %v770 = vadd.f32 %v658, %v769
        %v771 = vpop.f32.mrb[0].mxu0
        %772 = vmatprep.mubr.bf16.mxu0 0
        %773 = vmatmul.mubr.bf16.gmra.mrb[0].mxu0 %v650
        %v774 = vpop.f32.mrb[0].mxu0
        %v775 = vadd.f32 %v658, %v774
        %v776 = vpop.f32.mrb[0].mxu0
        %v777 = vpop.f32.mrb[0].mxu0
        %v778 = vadd.f32 %v658, %v777
        %v779 = vpop.f32.mrb[0].mxu0
        %780 = vmatprep.mubr.bf16.mxu0 0
        %781 = vmatmul.mubr.bf16.gmra.mrb[0].mxu0 %v651
        %v782 = vpop.f32.mrb[0].mxu0
        %v783 = vadd.f32 %v658, %v782
        %v784 = vpop.f32.mrb[0].mxu0
        %v785 = vpop.f32.mrb[0].mxu0
        %v786 = vadd.f32 %v658, %v785
        %v787 = vpop.f32.mrb[0].mxu0
        %788 = vmatprep.mubr.bf16.mxu0 0
        %789 = vmatmul.mubr.bf16.gmra.mrb[0].mxu0 %v652
        %v790 = vpop.f32.mrb[0].mxu0
        %v791 = vadd.f32 %v658, %v790
        %v792 = vpop.f32.mrb[0].mxu0
        %v793 = vpop.f32.mrb[0].mxu0
        %v794 = vadd.f32 %v658, %v793
        %v795 = vpop.f32.mrb[0].mxu0
        %796 = vmatprep.mubr.bf16.mxu0 0
        %797 = vmatmul.mubr.bf16.gmra.mrb[0].mxu0 %v653
        %v798 = vpop.f32.mrb[0].mxu0
        %v799 = vadd.f32 %v658, %v798
        %v800 = vpop.f32.mrb[0].mxu0
        %v801 = vpop.f32.mrb[0].mxu0
        %v802 = vadd.f32 %v658, %v801
        %v803 = vpop.f32.mrb[0].mxu0
        %804 = vdwg.mxu0
        %s805 = scalar_lea.vmem [#allocation2], 192
        %v806 = vld [vmem:[%s805] sm:$0xf]
        %v807 = vld [vmem:[%s805 + $0x4] sm:$0xf]
        %v808 = vld [vmem:[%s805 + $0x8] sm:$0xf]
        %v809 = vld [vmem:[%s805 + $0xc] sm:$0xf]
        %v810 = vld [vmem:[%s805 + $0x10] sm:$0xf]
        %v811 = vld [vmem:[%s805 + $0x14] sm:$0xf]
        %v812 = vld [vmem:[%s805 + $0x18] sm:$0xf]
        %v813 = vld [vmem:[%s805 + $0x1c] sm:$0xf]
        %v814 = vld [vmem:[%s805 + $0x20] sm:$0xf]
        %v815 = vld [vmem:[%s805 + $0x24] sm:$0xf]
        %v816 = vld [vmem:[%s805 + $0x28] sm:$0xf]
        %v817 = vld [vmem:[%s805 + $0x2c] sm:$0xf]
        %v818 = vld [vmem:[%s805 + $0x30] sm:$0xf]
        %v819 = vld [vmem:[%s805 + $0x34] sm:$0xf]
        %v820 = vld [vmem:[%s805 + $0x38] sm:$0xf]
        %v821 = vld [vmem:[%s805 + $0x3c] sm:$0xf]
        %s822 = scalar_lea.vmem %s2, 3
        %v823 = vld [vmem:[%s822] sm:$0x1]
        %v824 = vpack.c.bf16 %v746, %v743
        %v825 = vpack.c.bf16 %v754, %v751
        %v826 = vpack.c.bf16 %v762, %v759
        %v827 = vpack.c.bf16 %v770, %v767
        %v828 = vpack.c.bf16 %v778, %v775
        %v829 = vpack.c.bf16 %v786, %v783
        %v830 = vpack.c.bf16 %v794, %v791
        %v831 = vpack.c.bf16 %v802, %v799
        %v833 = vlaneseq
        %v834 = vshrl.u32 %v833, 7
        %v835 = vsub.s32 0, %v834
        %v836 = vrot.slane %v823, %v835
        %v854 = vunpack.c.l.b16 %v806
        %v855 = vunpack.c.l.b16 %v807
        %v856 = vunpack.c.l.b16 %v808
        %v857 = vunpack.c.l.b16 %v809
        %v858 = vunpack.c.l.b16 %v810
        %v859 = vunpack.c.l.b16 %v811
        %v860 = vunpack.c.l.b16 %v812
        %v861 = vunpack.c.l.b16 %v813
        %v862 = vunpack.c.l.b16 %v814
        %v863 = vunpack.c.l.b16 %v815
        %v864 = vunpack.c.l.b16 %v816
        %v865 = vunpack.c.l.b16 %v817
        %v866 = vunpack.c.l.b16 %v818
        %v867 = vunpack.c.l.b16 %v819
        %v868 = vunpack.c.l.b16 %v820
        %v869 = vunpack.c.l.b16 %v821
        %v870 = vpack.c.b16 %v855, %v854
        %v871 = vpack.c.b16 %v857, %v856
        %v872 = vpack.c.b16 %v859, %v858
        %v873 = vpack.c.b16 %v861, %v860
        %v874 = vpack.c.b16 %v863, %v862
        %v875 = vpack.c.b16 %v865, %v864
        %v876 = vpack.c.b16 %v867, %v866
        %v877 = vpack.c.b16 %v869, %v868
        %886 = vmatprep.subr.bf16.mxu0 0
        %887 = vmatpush1.bf16.msra.mxu0 %v870
        %888 = vmatprep.subr.bf16.mxu0 0
        %889 = vmatpush1.bf16.msra.mxu0 %v871
        %890 = vmatprep.subr.bf16.mxu0 0
        %891 = vmatpush1.bf16.msra.mxu0 %v872
        %892 = vmatprep.subr.bf16.mxu0 0
        %893 = vmatpush1.bf16.msra.mxu0 %v873
        %894 = vmatprep.subr.bf16.mxu0 0
        %895 = vmatpush1.bf16.msra.mxu0 %v874
        %896 = vmatprep.subr.bf16.mxu0 0
        %897 = vmatpush1.bf16.msra.mxu0 %v875
        %898 = vmatprep.subr.bf16.mxu0 0
        %899 = vmatpush1.bf16.msra.mxu0 %v876
        %900 = vmatprep.subr.bf16.mxu0 0
        %901 = vmatpush1.bf16.msra.mxu0 %v877
        %902 = vmatprep.subr.bf16.mxu0 0
        %903 = vmatpush1.bf16.msra.mxu0 0
        %904 = vmatprep.subr.bf16.mxu0 0
        %905 = vmatpush1.bf16.msra.mxu0 0
        %906 = vmatprep.subr.bf16.mxu0 0
        %907 = vmatpush1.bf16.msra.mxu0 0
        %908 = vmatprep.subr.bf16.mxu0 0
        %909 = vmatpush1.bf16.msra.mxu0 0
        %910 = vmatprep.subr.bf16.mxu0 0
        %911 = vmatpush1.bf16.msra.mxu0 0
        %912 = vmatprep.subr.bf16.mxu0 0
        %913 = vmatpush1.bf16.msra.mxu0 0
        %914 = vmatprep.subr.bf16.mxu0 0
        %915 = vmatpush1.bf16.msra.mxu0 0
        %916 = vmatprep.subr.bf16.mxu0 0
        %917 = vmatpush1.bf16.msra.mxu0 0
        %918 = vmatprep.mubr.bf16.mxu0 0
        %919 = vmatmul.mubr.bf16.gmra.mrb[0].mxu0 %v824
        %v920 = vpop.f32.mrb[0].mxu0
        %v921 = vadd.f32 %v836, %v920
        %v922 = vpop.f32.mrb[0].mxu0
        %v923 = vpop.f32.mrb[0].mxu0
        %v924 = vadd.f32 %v836, %v923
        %v925 = vpop.f32.mrb[0].mxu0
        %926 = vmatprep.mubr.bf16.mxu0 0
        %927 = vmatmul.mubr.bf16.gmra.mrb[0].mxu0 %v825
        %v928 = vpop.f32.mrb[0].mxu0
        %v929 = vadd.f32 %v836, %v928
        %v930 = vpop.f32.mrb[0].mxu0
        %v931 = vpop.f32.mrb[0].mxu0
        %v932 = vadd.f32 %v836, %v931
        %v933 = vpop.f32.mrb[0].mxu0
        %934 = vmatprep.mubr.bf16.mxu0 0
        %935 = vmatmul.mubr.bf16.gmra.mrb[0].mxu0 %v826
        %v936 = vpop.f32.mrb[0].mxu0
        %v937 = vadd.f32 %v836, %v936
        %v938 = vpop.f32.mrb[0].mxu0
        %v939 = vpop.f32.mrb[0].mxu0
        %v940 = vadd.f32 %v836, %v939
        %v941 = vpop.f32.mrb[0].mxu0
        %942 = vmatprep.mubr.bf16.mxu0 0
        %943 = vmatmul.mubr.bf16.gmra.mrb[0].mxu0 %v827
        %v944 = vpop.f32.mrb[0].mxu0
        %v945 = vadd.f32 %v836, %v944
        %v946 = vpop.f32.mrb[0].mxu0
        %v947 = vpop.f32.mrb[0].mxu0
        %v948 = vadd.f32 %v836, %v947
        %v949 = vpop.f32.mrb[0].mxu0
        %950 = vmatprep.mubr.bf16.mxu0 0
        %951 = vmatmul.mubr.bf16.gmra.mrb[0].mxu0 %v828
        %v952 = vpop.f32.mrb[0].mxu0
        %v953 = vadd.f32 %v836, %v952
        %v954 = vpop.f32.mrb[0].mxu0
        %v955 = vpop.f32.mrb[0].mxu0
        %v956 = vadd.f32 %v836, %v955
        %v957 = vpop.f32.mrb[0].mxu0
        %958 = vmatprep.mubr.bf16.mxu0 0
        %959 = vmatmul.mubr.bf16.gmra.mrb[0].mxu0 %v829
        %v960 = vpop.f32.mrb[0].mxu0
        %v961 = vadd.f32 %v836, %v960
        %v962 = vpop.f32.mrb[0].mxu0
        %v963 = vpop.f32.mrb[0].mxu0
        %v964 = vadd.f32 %v836, %v963
        %v965 = vpop.f32.mrb[0].mxu0
        %966 = vmatprep.mubr.bf16.mxu0 0
        %967 = vmatmul.mubr.bf16.gmra.mrb[0].mxu0 %v830
        %v968 = vpop.f32.mrb[0].mxu0
        %v969 = vadd.f32 %v836, %v968
        %v970 = vpop.f32.mrb[0].mxu0
        %v971 = vpop.f32.mrb[0].mxu0
        %v972 = vadd.f32 %v836, %v971
        %v973 = vpop.f32.mrb[0].mxu0
        %974 = vmatprep.mubr.bf16.mxu0 0
        %975 = vmatmul.mubr.bf16.gmra.mrb[0].mxu0 %v831
        %v976 = vpop.f32.mrb[0].mxu0
        %v977 = vadd.f32 %v836, %v976
        %v978 = vpop.f32.mrb[0].mxu0
        %v979 = vpop.f32.mrb[0].mxu0
        %v980 = vadd.f32 %v836, %v979
        %v981 = vpop.f32.mrb[0].mxu0
        %982 = vdwg.mxu0
        %v983 = vmax.f32 %v921, 0.0
        %v984 = vmax.f32 %v924, 0.0
        %v985 = vmax.f32 %v929, 0.0
        %v986 = vmax.f32 %v932, 0.0
        %v987 = vmax.f32 %v937, 0.0
        %v988 = vmax.f32 %v940, 0.0
        %v989 = vmax.f32 %v945, 0.0
        %v990 = vmax.f32 %v948, 0.0
        %v991 = vmax.f32 %v953, 0.0
        %v992 = vmax.f32 %v956, 0.0
        %v993 = vmax.f32 %v961, 0.0
        %v994 = vmax.f32 %v964, 0.0
        %v995 = vmax.f32 %v969, 0.0
        %v996 = vmax.f32 %v972, 0.0
        %v997 = vmax.f32 %v977, 0.0
        %v998 = vmax.f32 %v980, 0.0
        %s999 = scalar_lea.vmem [#allocation2], 256
        %v1000 = vld [vmem:[%s999] sm:$0xf]
        %v1001 = vld [vmem:[%s999 + $0x4] sm:$0xf]
        %v1002 = vld [vmem:[%s999 + $0x8] sm:$0xf]
        %v1003 = vld [vmem:[%s999 + $0xc] sm:$0xf]
        %v1004 = vld [vmem:[%s999 + $0x10] sm:$0xf]
        %v1005 = vld [vmem:[%s999 + $0x14] sm:$0xf]
        %v1006 = vld [vmem:[%s999 + $0x18] sm:$0xf]
        %v1007 = vld [vmem:[%s999 + $0x1c] sm:$0xf]
        %v1008 = vld [vmem:[%s999 + $0x20] sm:$0xf]
        %v1009 = vld [vmem:[%s999 + $0x24] sm:$0xf]
        %v1010 = vld [vmem:[%s999 + $0x28] sm:$0xf]
        %v1011 = vld [vmem:[%s999 + $0x2c] sm:$0xf]
        %v1012 = vld [vmem:[%s999 + $0x30] sm:$0xf]
        %v1013 = vld [vmem:[%s999 + $0x34] sm:$0xf]
        %v1014 = vld [vmem:[%s999 + $0x38] sm:$0xf]
        %v1015 = vld [vmem:[%s999 + $0x3c] sm:$0xf]
        %s1016 = scalar_lea.vmem %s2, 4
        %v1017 = vld [vmem:[%s1016] sm:$0x1]
        %v1018 = vpack.c.bf16 %v984, %v983
        %v1019 = vpack.c.bf16 %v986, %v985
        %v1020 = vpack.c.bf16 %v988, %v987
        %v1021 = vpack.c.bf16 %v990, %v989
        %v1022 = vpack.c.bf16 %v992, %v991
        %v1023 = vpack.c.bf16 %v994, %v993
        %v1024 = vpack.c.bf16 %v996, %v995
        %v1025 = vpack.c.bf16 %v998, %v997
        %v1027 = vlaneseq
        %v1028 = vshrl.u32 %v1027, 7
        %v1029 = vsub.s32 0, %v1028
        %v1030 = vrot.slane %v1017, %v1029
        %v1048 = vunpack.c.l.b16 %v1000
        %v1049 = vunpack.c.l.b16 %v1001
        %v1050 = vunpack.c.l.b16 %v1002
        %v1051 = vunpack.c.l.b16 %v1003
        %v1052 = vunpack.c.l.b16 %v1004
        %v1053 = vunpack.c.l.b16 %v1005
        %v1054 = vunpack.c.l.b16 %v1006
        %v1055 = vunpack.c.l.b16 %v1007
        %v1056 = vunpack.c.l.b16 %v1008
        %v1057 = vunpack.c.l.b16 %v1009
        %v1058 = vunpack.c.l.b16 %v1010
        %v1059 = vunpack.c.l.b16 %v1011
        %v1060 = vunpack.c.l.b16 %v1012
        %v1061 = vunpack.c.l.b16 %v1013
        %v1062 = vunpack.c.l.b16 %v1014
        %v1063 = vunpack.c.l.b16 %v1015
        %v1064 = vpack.c.b16 %v1049, %v1048
        %v1065 = vpack.c.b16 %v1051, %v1050
        %v1066 = vpack.c.b16 %v1053, %v1052
        %v1067 = vpack.c.b16 %v1055, %v1054
        %v1068 = vpack.c.b16 %v1057, %v1056
        %v1069 = vpack.c.b16 %v1059, %v1058
        %v1070 = vpack.c.b16 %v1061, %v1060
        %v1071 = vpack.c.b16 %v1063, %v1062
        %1080 = vmatprep.subr.bf16.mxu0 0
        %1081 = vmatpush1.bf16.msra.mxu0 %v1064
        %1082 = vmatprep.subr.bf16.mxu0 0
        %1083 = vmatpush1.bf16.msra.mxu0 %v1065
        %1084 = vmatprep.subr.bf16.mxu0 0
        %1085 = vmatpush1.bf16.msra.mxu0 %v1066
        %1086 = vmatprep.subr.bf16.mxu0 0
        %1087 = vmatpush1.bf16.msra.mxu0 %v1067
        %1088 = vmatprep.subr.bf16.mxu0 0
        %1089 = vmatpush1.bf16.msra.mxu0 %v1068
        %1090 = vmatprep.subr.bf16.mxu0 0
        %1091 = vmatpush1.bf16.msra.mxu0 %v1069
        %1092 = vmatprep.subr.bf16.mxu0 0
        %1093 = vmatpush1.bf16.msra.mxu0 %v1070
        %1094 = vmatprep.subr.bf16.mxu0 0
        %1095 = vmatpush1.bf16.msra.mxu0 %v1071
        %1096 = vmatprep.subr.bf16.mxu0 0
        %1097 = vmatpush1.bf16.msra.mxu0 0
        %1098 = vmatprep.subr.bf16.mxu0 0
        %1099 = vmatpush1.bf16.msra.mxu0 0
        %1100 = vmatprep.subr.bf16.mxu0 0
        %1101 = vmatpush1.bf16.msra.mxu0 0
        %1102 = vmatprep.subr.bf16.mxu0 0
        %1103 = vmatpush1.bf16.msra.mxu0 0
        %1104 = vmatprep.subr.bf16.mxu0 0
        %1105 = vmatpush1.bf16.msra.mxu0 0
        %1106 = vmatprep.subr.bf16.mxu0 0
        %1107 = vmatpush1.bf16.msra.mxu0 0
        %1108 = vmatprep.subr.bf16.mxu0 0
        %1109 = vmatpush1.bf16.msra.mxu0 0
        %1110 = vmatprep.subr.bf16.mxu0 0
        %1111 = vmatpush1.bf16.msra.mxu0 0
        %1112 = vmatprep.mubr.bf16.mxu0 0
        %1113 = vmatmul.mubr.bf16.gmra.mrb[0].mxu0 %v1018
        %v1114 = vpop.f32.mrb[0].mxu0
        %v1115 = vadd.f32 %v1030, %v1114
        %v1116 = vpop.f32.mrb[0].mxu0
        %v1117 = vpop.f32.mrb[0].mxu0
        %v1118 = vadd.f32 %v1030, %v1117
        %v1119 = vpop.f32.mrb[0].mxu0
        %1120 = vmatprep.mubr.bf16.mxu0 0
        %1121 = vmatmul.mubr.bf16.gmra.mrb[0].mxu0 %v1019
        %v1122 = vpop.f32.mrb[0].mxu0
        %v1123 = vadd.f32 %v1030, %v1122
        %v1124 = vpop.f32.mrb[0].mxu0
        %v1125 = vpop.f32.mrb[0].mxu0
        %v1126 = vadd.f32 %v1030, %v1125
        %v1127 = vpop.f32.mrb[0].mxu0
        %1128 = vmatprep.mubr.bf16.mxu0 0
        %1129 = vmatmul.mubr.bf16.gmra.mrb[0].mxu0 %v1020
        %v1130 = vpop.f32.mrb[0].mxu0
        %v1131 = vadd.f32 %v1030, %v1130
        %v1132 = vpop.f32.mrb[0].mxu0
        %v1133 = vpop.f32.mrb[0].mxu0
        %v1134 = vadd.f32 %v1030, %v1133
        %v1135 = vpop.f32.mrb[0].mxu0
        %1136 = vmatprep.mubr.bf16.mxu0 0
        %1137 = vmatmul.mubr.bf16.gmra.mrb[0].mxu0 %v1021
        %v1138 = vpop.f32.mrb[0].mxu0
        %v1139 = vadd.f32 %v1030, %v1138
        %v1140 = vpop.f32.mrb[0].mxu0
        %v1141 = vpop.f32.mrb[0].mxu0
        %v1142 = vadd.f32 %v1030, %v1141
        %v1143 = vpop.f32.mrb[0].mxu0
        %1144 = vmatprep.mubr.bf16.mxu0 0
        %1145 = vmatmul.mubr.bf16.gmra.mrb[0].mxu0 %v1022
        %v1146 = vpop.f32.mrb[0].mxu0
        %v1147 = vadd.f32 %v1030, %v1146
        %v1148 = vpop.f32.mrb[0].mxu0
        %v1149 = vpop.f32.mrb[0].mxu0
        %v1150 = vadd.f32 %v1030, %v1149
        %v1151 = vpop.f32.mrb[0].mxu0
        %1152 = vmatprep.mubr.bf16.mxu0 0
        %1153 = vmatmul.mubr.bf16.gmra.mrb[0].mxu0 %v1023
        %v1154 = vpop.f32.mrb[0].mxu0
        %v1155 = vadd.f32 %v1030, %v1154
        %v1156 = vpop.f32.mrb[0].mxu0
        %v1157 = vpop.f32.mrb[0].mxu0
        %v1158 = vadd.f32 %v1030, %v1157
        %v1159 = vpop.f32.mrb[0].mxu0
        %1160 = vmatprep.mubr.bf16.mxu0 0
        %1161 = vmatmul.mubr.bf16.gmra.mrb[0].mxu0 %v1024
        %v1162 = vpop.f32.mrb[0].mxu0
        %v1163 = vadd.f32 %v1030, %v1162
        %v1164 = vpop.f32.mrb[0].mxu0
        %v1165 = vpop.f32.mrb[0].mxu0
        %v1166 = vadd.f32 %v1030, %v1165
        %v1167 = vpop.f32.mrb[0].mxu0
        %1168 = vmatprep.mubr.bf16.mxu0 0
        %1169 = vmatmul.mubr.bf16.gmra.mrb[0].mxu0 %v1025
        %v1170 = vpop.f32.mrb[0].mxu0
        %v1171 = vadd.f32 %v1030, %v1170
        %v1172 = vpop.f32.mrb[0].mxu0
        %v1173 = vpop.f32.mrb[0].mxu0
        %v1174 = vadd.f32 %v1030, %v1173
        %v1175 = vpop.f32.mrb[0].mxu0
        %1176 = vdwg.mxu0
        %v1177 = vmax.f32 %v1115, 0.0
        %v1178 = vmax.f32 %v1118, 0.0
        %v1179 = vmax.f32 %v1123, 0.0
        %v1180 = vmax.f32 %v1126, 0.0
        %v1181 = vmax.f32 %v1131, 0.0
        %v1182 = vmax.f32 %v1134, 0.0
        %v1183 = vmax.f32 %v1139, 0.0
        %v1184 = vmax.f32 %v1142, 0.0
        %v1185 = vmax.f32 %v1147, 0.0
        %v1186 = vmax.f32 %v1150, 0.0
        %v1187 = vmax.f32 %v1155, 0.0
        %v1188 = vmax.f32 %v1158, 0.0
        %v1189 = vmax.f32 %v1163, 0.0
        %v1190 = vmax.f32 %v1166, 0.0
        %v1191 = vmax.f32 %v1171, 0.0
        %v1192 = vmax.f32 %v1174, 0.0
        %s1193 = scalar_lea.vmem [#allocation2], 320
        %v1194 = vld [vmem:[%s1193] sm:$0xf]
        %v1195 = vld [vmem:[%s1193 + $0x4] sm:$0xf]
        %v1196 = vld [vmem:[%s1193 + $0x8] sm:$0xf]
        %v1197 = vld [vmem:[%s1193 + $0xc] sm:$0xf]
        %v1198 = vld [vmem:[%s1193 + $0x10] sm:$0xf]
        %v1199 = vld [vmem:[%s1193 + $0x14] sm:$0xf]
        %v1200 = vld [vmem:[%s1193 + $0x18] sm:$0xf]
        %v1201 = vld [vmem:[%s1193 + $0x1c] sm:$0xf]
        %v1202 = vld [vmem:[%s1193 + $0x20] sm:$0xf]
        %v1203 = vld [vmem:[%s1193 + $0x24] sm:$0xf]
        %v1204 = vld [vmem:[%s1193 + $0x28] sm:$0xf]
        %v1205 = vld [vmem:[%s1193 + $0x2c] sm:$0xf]
        %v1206 = vld [vmem:[%s1193 + $0x30] sm:$0xf]
        %v1207 = vld [vmem:[%s1193 + $0x34] sm:$0xf]
        %v1208 = vld [vmem:[%s1193 + $0x38] sm:$0xf]
        %v1209 = vld [vmem:[%s1193 + $0x3c] sm:$0xf]
        %s1210 = scalar_lea.vmem %s2, 5
        %v1211 = vld [vmem:[%s1210] sm:$0x1]
        %v1212 = vpack.c.bf16 %v1178, %v1177
        %v1213 = vpack.c.bf16 %v1180, %v1179
        %v1214 = vpack.c.bf16 %v1182, %v1181
        %v1215 = vpack.c.bf16 %v1184, %v1183
        %v1216 = vpack.c.bf16 %v1186, %v1185
        %v1217 = vpack.c.bf16 %v1188, %v1187
        %v1218 = vpack.c.bf16 %v1190, %v1189
        %v1219 = vpack.c.bf16 %v1192, %v1191
        %v1221 = vlaneseq
        %v1222 = vshrl.u32 %v1221, 7
        %v1223 = vsub.s32 0, %v1222
        %v1224 = vrot.slane %v1211, %v1223
        %v1242 = vunpack.c.l.b16 %v1194
        %v1243 = vunpack.c.l.b16 %v1195
        %v1244 = vunpack.c.l.b16 %v1196
        %v1245 = vunpack.c.l.b16 %v1197
        %v1246 = vunpack.c.l.b16 %v1198
        %v1247 = vunpack.c.l.b16 %v1199
        %v1248 = vunpack.c.l.b16 %v1200
        %v1249 = vunpack.c.l.b16 %v1201
        %v1250 = vunpack.c.l.b16 %v1202
        %v1251 = vunpack.c.l.b16 %v1203
        %v1252 = vunpack.c.l.b16 %v1204
        %v1253 = vunpack.c.l.b16 %v1205
        %v1254 = vunpack.c.l.b16 %v1206
        %v1255 = vunpack.c.l.b16 %v1207
        %v1256 = vunpack.c.l.b16 %v1208
        %v1257 = vunpack.c.l.b16 %v1209
        %v1258 = vpack.c.b16 %v1243, %v1242
        %v1259 = vpack.c.b16 %v1245, %v1244
        %v1260 = vpack.c.b16 %v1247, %v1246
        %v1261 = vpack.c.b16 %v1249, %v1248
        %v1262 = vpack.c.b16 %v1251, %v1250
        %v1263 = vpack.c.b16 %v1253, %v1252
        %v1264 = vpack.c.b16 %v1255, %v1254
        %v1265 = vpack.c.b16 %v1257, %v1256
        %1274 = vmatprep.subr.bf16.mxu0 0
        %1275 = vmatpush1.bf16.msra.mxu0 %v1258
        %1276 = vmatprep.subr.bf16.mxu0 0
        %1277 = vmatpush1.bf16.msra.mxu0 %v1259
        %1278 = vmatprep.subr.bf16.mxu0 0
        %1279 = vmatpush1.bf16.msra.mxu0 %v1260
        %1280 = vmatprep.subr.bf16.mxu0 0
        %1281 = vmatpush1.bf16.msra.mxu0 %v1261
        %1282 = vmatprep.subr.bf16.mxu0 0
        %1283 = vmatpush1.bf16.msra.mxu0 %v1262
        %1284 = vmatprep.subr.bf16.mxu0 0
        %1285 = vmatpush1.bf16.msra.mxu0 %v1263
        %1286 = vmatprep.subr.bf16.mxu0 0
        %1287 = vmatpush1.bf16.msra.mxu0 %v1264
        %1288 = vmatprep.subr.bf16.mxu0 0
        %1289 = vmatpush1.bf16.msra.mxu0 %v1265
        %1290 = vmatprep.subr.bf16.mxu0 0
        %1291 = vmatpush1.bf16.msra.mxu0 0
        %1292 = vmatprep.subr.bf16.mxu0 0
        %1293 = vmatpush1.bf16.msra.mxu0 0
        %1294 = vmatprep.subr.bf16.mxu0 0
        %1295 = vmatpush1.bf16.msra.mxu0 0
        %1296 = vmatprep.subr.bf16.mxu0 0
        %1297 = vmatpush1.bf16.msra.mxu0 0
        %1298 = vmatprep.subr.bf16.mxu0 0
        %1299 = vmatpush1.bf16.msra.mxu0 0
        %1300 = vmatprep.subr.bf16.mxu0 0
        %1301 = vmatpush1.bf16.msra.mxu0 0
        %1302 = vmatprep.subr.bf16.mxu0 0
        %1303 = vmatpush1.bf16.msra.mxu0 0
        %1304 = vmatprep.subr.bf16.mxu0 0
        %1305 = vmatpush1.bf16.msra.mxu0 0
        %1306 = vmatprep.mubr.bf16.mxu0 0
        %1307 = vmatmul.mubr.bf16.gmra.mrb[0].mxu0 %v1212
        %v1308 = vpop.f32.mrb[0].mxu0
        %v1309 = vadd.f32 %v1224, %v1308
        %v1310 = vpop.f32.mrb[0].mxu0
        %v1311 = vpop.f32.mrb[0].mxu0
        %v1312 = vadd.f32 %v1224, %v1311
        %v1313 = vpop.f32.mrb[0].mxu0
        %1314 = vmatprep.mubr.bf16.mxu0 0
        %1315 = vmatmul.mubr.bf16.gmra.mrb[0].mxu0 %v1213
        %v1316 = vpop.f32.mrb[0].mxu0
        %v1317 = vadd.f32 %v1224, %v1316
        %v1318 = vpop.f32.mrb[0].mxu0
        %v1319 = vpop.f32.mrb[0].mxu0
        %v1320 = vadd.f32 %v1224, %v1319
        %v1321 = vpop.f32.mrb[0].mxu0
        %1322 = vmatprep.mubr.bf16.mxu0 0
        %1323 = vmatmul.mubr.bf16.gmra.mrb[0].mxu0 %v1214
        %v1324 = vpop.f32.mrb[0].mxu0
        %v1325 = vadd.f32 %v1224, %v1324
        %v1326 = vpop.f32.mrb[0].mxu0
        %v1327 = vpop.f32.mrb[0].mxu0
        %v1328 = vadd.f32 %v1224, %v1327
        %v1329 = vpop.f32.mrb[0].mxu0
        %1330 = vmatprep.mubr.bf16.mxu0 0
        %1331 = vmatmul.mubr.bf16.gmra.mrb[0].mxu0 %v1215
        %v1332 = vpop.f32.mrb[0].mxu0
        %v1333 = vadd.f32 %v1224, %v1332
        %v1334 = vpop.f32.mrb[0].mxu0
        %v1335 = vpop.f32.mrb[0].mxu0
        %v1336 = vadd.f32 %v1224, %v1335
        %v1337 = vpop.f32.mrb[0].mxu0
        %1338 = vmatprep.mubr.bf16.mxu0 0
        %1339 = vmatmul.mubr.bf16.gmra.mrb[0].mxu0 %v1216
        %v1340 = vpop.f32.mrb[0].mxu0
        %v1341 = vadd.f32 %v1224, %v1340
        %v1342 = vpop.f32.mrb[0].mxu0
        %v1343 = vpop.f32.mrb[0].mxu0
        %v1344 = vadd.f32 %v1224, %v1343
        %v1345 = vpop.f32.mrb[0].mxu0
        %1346 = vmatprep.mubr.bf16.mxu0 0
        %1347 = vmatmul.mubr.bf16.gmra.mrb[0].mxu0 %v1217
        %v1348 = vpop.f32.mrb[0].mxu0
        %v1349 = vadd.f32 %v1224, %v1348
        %v1350 = vpop.f32.mrb[0].mxu0
        %v1351 = vpop.f32.mrb[0].mxu0
        %v1352 = vadd.f32 %v1224, %v1351
        %v1353 = vpop.f32.mrb[0].mxu0
        %1354 = vmatprep.mubr.bf16.mxu0 0
        %1355 = vmatmul.mubr.bf16.gmra.mrb[0].mxu0 %v1218
        %v1356 = vpop.f32.mrb[0].mxu0
        %v1357 = vadd.f32 %v1224, %v1356
        %v1358 = vpop.f32.mrb[0].mxu0
        %v1359 = vpop.f32.mrb[0].mxu0
        %v1360 = vadd.f32 %v1224, %v1359
        %v1361 = vpop.f32.mrb[0].mxu0
        %1362 = vmatprep.mubr.bf16.mxu0 0
        %1363 = vmatmul.mubr.bf16.gmra.mrb[0].mxu0 %v1219
        %v1364 = vpop.f32.mrb[0].mxu0
        %v1365 = vadd.f32 %v1224, %v1364
        %v1366 = vpop.f32.mrb[0].mxu0
        %v1367 = vpop.f32.mrb[0].mxu0
        %v1368 = vadd.f32 %v1224, %v1367
        %v1369 = vpop.f32.mrb[0].mxu0
        %1370 = vdwg.mxu0
        %1371 = vst.msk [vmem:[%s187] sm:$0xff] %vm224, %v1309
        %1372 = vst.msk [vmem:[%s187 + $0x8] sm:$0xff] %vm224, %v1312
        %1373 = vst.msk [vmem:[%s187 + $0x10] sm:$0xff] %vm224, %v1317
        %1374 = vst.msk [vmem:[%s187 + $0x18] sm:$0xff] %vm224, %v1320
        %1375 = vst.msk [vmem:[%s187 + $0x20] sm:$0xff] %vm224, %v1325
        %1376 = vst.msk [vmem:[%s187 + $0x28] sm:$0xff] %vm224, %v1328
        %1377 = vst.msk [vmem:[%s187 + $0x30] sm:$0xff] %vm224, %v1333
        %1378 = vst.msk [vmem:[%s187 + $0x38] sm:$0xff] %vm224, %v1336
        %1379 = vst.msk [vmem:[%s187 + $0x40] sm:$0xff] %vm224, %v1341
        %1380 = vst.msk [vmem:[%s187 + $0x48] sm:$0xff] %vm224, %v1344
        %1381 = vst.msk [vmem:[%s187 + $0x50] sm:$0xff] %vm224, %v1349
        %1382 = vst.msk [vmem:[%s187 + $0x58] sm:$0xff] %vm224, %v1352
        %1383 = vst.msk [vmem:[%s187 + $0x60] sm:$0xff] %vm224, %v1357
        %1384 = vst.msk [vmem:[%s187 + $0x68] sm:$0xff] %vm224, %v1360
        %1385 = vst.msk [vmem:[%s187 + $0x70] sm:$0xff] %vm224, %v1365
        %1386 = vst.msk [vmem:[%s187 + $0x78] sm:$0xff] %vm224, %v1368
        %s1387 = sand.u32 %s91, 1
        %s1388 = sand.u32 %s91, 1
        %s1389 = smul.addr %s1388, 128
        %s1390 = scalar_lea.vmem [#allocation4], %s1389
        // Predicated region
        $region37: #{_autoencoder_forward_jit.1} parent=31 // pred_check
          %p1391 = pneg %p101
        $region38: #{_autoencoder_forward_jit.1} parent=31 // pred_check_branch
          %1393 = sbr.rel (%p1391) target = $region40
        $region39: #{_autoencoder_forward_jit.1} parent=31 // pred_region
          %s1394 = smul.u32 16, %s15
          %s1395 = ssub.s32 25, %s1394
          %p1396 = scmp.lt.s32.totalorder %s1395, 16
          %s1397 = scalar_select %p1396, %s1395, 16
          %s1398 = smul.u32 128, %s1397
          %p1399 = scmp.ne.s32.totalorder 0, %s1398
          %s1400 = smul.addr %s1394, 8
          %s1401 = scalar_lea.vmem %s3, %s1400
          // Predicated region
          $region41: #{_autoencoder_forward_jit.1} parent=39 // pred_check
            %p1402 = pneg %p1399
          $region42: #{_autoencoder_forward_jit.1} parent=39 // pred_check_branch
            %1404 = sbr.rel (%p1402) target = $region44
          $region43: #{_autoencoder_forward_jit.1} parent=39 // pred_region
            // Predicated region
            $region45: #{_autoencoder_forward_jit.1} parent=43 // pred_check
              _
            $region46: #{_autoencoder_forward_jit.1} parent=43 // pred_check_branch
              %1406 = sbr.rel (0) target = $region48
            $region47: #{_autoencoder_forward_jit.1} parent=43 // pred_region
              // Predicated region
              $region67: #{_autoencoder_forward_jit.1} parent=47 // pred_check
                _
              $region68: #{_autoencoder_forward_jit.1} parent=47 // pred_check_branch
                %1485 = sbr.rel (0) target = $region70
              $region69: #{_autoencoder_forward_jit.1} parent=47 // pred_region
                %s1486 = sshrl.u32 %s1397, 4
                // While loop
                $region71: #{_autoencoder_forward_jit.1} parent=69 // loop_pre_header
                  _
                $region72: #{_autoencoder_forward_jit.1} parent=69 // loop_header
                  %s1488 = sphi 0, %s1490
                  %p1489 = scmp.ge.s32.totalorder %s1488, %s1486
                  %s1493 = sphi 0, %s1530
                  %s1494 = sphi %s1390, %s1533
                  %s1495 = sphi %s1401, %s1534
                $region73: #{_autoencoder_forward_jit.1} parent=69 // loop_header_branch
                  %1492 = sbr.rel (%p1489) target = $region77
                $region74: #{_autoencoder_forward_jit.1} parent=69 // loop_body
                  %v1496 = vld [vmem:[%s1494] sm:$0xff]
                  %1497 = vst [vmem:[%s1495] sm:$0xff] %v1496
                  %v1498 = vld [vmem:[%s1494 + $0x8] sm:$0xff]
                  %1499 = vst [vmem:[%s1495 + $0x8] sm:$0xff] %v1498
                  %v1500 = vld [vmem:[%s1494 + $0x10] sm:$0xff]
                  %1501 = vst [vmem:[%s1495 + $0x10] sm:$0xff] %v1500
                  %v1502 = vld [vmem:[%s1494 + $0x18] sm:$0xff]
                  %1503 = vst [vmem:[%s1495 + $0x18] sm:$0xff] %v1502
                  %v1504 = vld [vmem:[%s1494 + $0x20] sm:$0xff]
                  %1505 = vst [vmem:[%s1495 + $0x20] sm:$0xff] %v1504
                  %v1506 = vld [vmem:[%s1494 + $0x28] sm:$0xff]
                  %1507 = vst [vmem:[%s1495 + $0x28] sm:$0xff] %v1506
                  %v1508 = vld [vmem:[%s1494 + $0x30] sm:$0xff]
                  %1509 = vst [vmem:[%s1495 + $0x30] sm:$0xff] %v1508
                  %v1510 = vld [vmem:[%s1494 + $0x38] sm:$0xff]
                  %1511 = vst [vmem:[%s1495 + $0x38] sm:$0xff] %v1510
                  %v1512 = vld [vmem:[%s1494 + $0x40] sm:$0xff]
                  %1513 = vst [vmem:[%s1495 + $0x40] sm:$0xff] %v1512
                  %v1514 = vld [vmem:[%s1494 + $0x48] sm:$0xff]
                  %1515 = vst [vmem:[%s1495 + $0x48] sm:$0xff] %v1514
                  %v1516 = vld [vmem:[%s1494 + $0x50] sm:$0xff]
                  %1517 = vst [vmem:[%s1495 + $0x50] sm:$0xff] %v1516
                  %v1518 = vld [vmem:[%s1494 + $0x58] sm:$0xff]
                  %1519 = vst [vmem:[%s1495 + $0x58] sm:$0xff] %v1518
                  %v1520 = vld [vmem:[%s1494 + $0x60] sm:$0xff]
                  %1521 = vst [vmem:[%s1495 + $0x60] sm:$0xff] %v1520
                  %v1522 = vld [vmem:[%s1494 + $0x68] sm:$0xff]
                  %1523 = vst [vmem:[%s1495 + $0x68] sm:$0xff] %v1522
                  %v1524 = vld [vmem:[%s1494 + $0x70] sm:$0xff]
                  %1525 = vst [vmem:[%s1495 + $0x70] sm:$0xff] %v1524
                  %v1526 = vld [vmem:[%s1494 + $0x78] sm:$0xff]
                  %1527 = vst [vmem:[%s1495 + $0x78] sm:$0xff] %v1526
                  %s1528 = sadd.s32 1, %s1493
                  %p1529 = scmp.ge.s32.totalorder %s1528, %s1486
                  %s1530 = scalar_select %p1529, 0, %s1528
                  %s1531 = smul.u32 %s1530, 128
                  %s1532 = smul.u32 %s1530, 128
                  %s1533 = scalar_lea.vmem %s1390, %s1531 [#allocation4]
                  %s1534 = scalar_lea.vmem %s1401, %s1532
                $region75: #{_autoencoder_forward_jit.1} parent=69 // loop_footer
                  %s1490 = sadd.s32 %s1488, 1
                $region76: #{_autoencoder_forward_jit.1} parent=69 // loop_footer_branch
                  %1487 = sbr.rel target = $region72
                $region77: #{_autoencoder_forward_jit.1} parent=69 // loop_exit
                  _
                %s1535 = sshrl.u32 %s1397, 4
                %s1536 = sand.u32 %s1397, 15
                %s1537 = smul.u32 %s1535, 16
                %s1538 = smul.u32 8, %s1537
                %s1539 = scalar_lea.vmem %s1390, %s1538 [#allocation4]
                %s1540 = smul.u32 8, %s1537
                %s1541 = scalar_lea.vmem %s1401, %s1540
                // While loop
                $region78: #{_autoencoder_forward_jit.1} parent=69 // loop_pre_header
                  _
                $region79: #{_autoencoder_forward_jit.1} parent=69 // loop_header
                  %s1543 = sphi 0, %s1545
                  %p1544 = scmp.ge.s32.totalorder %s1543, %s1536
                  %s1548 = sphi 0, %s1555
                  %s1549 = sphi %s1539, %s1558
                  %s1550 = sphi %s1541, %s1559
                $region80: #{_autoencoder_forward_jit.1} parent=69 // loop_header_branch
                  %1547 = sbr.rel (%p1544) target = $region84
                $region81: #{_autoencoder_forward_jit.1} parent=69 // loop_body
                  %v1551 = vld [vmem:[%s1549] sm:$0xff]
                  %1552 = vst [vmem:[%s1550] sm:$0xff] %v1551
                  %s1553 = sadd.s32 1, %s1548
                  %p1554 = scmp.ge.s32.totalorder %s1553, %s1536
                  %s1555 = scalar_select %p1554, 0, %s1553
                  %s1556 = smul.u32 %s1555, 8
                  %s1557 = smul.u32 %s1555, 8
                  %s1558 = scalar_lea.vmem %s1539, %s1556 [#allocation4]
                  %s1559 = scalar_lea.vmem %s1541, %s1557
                $region82: #{_autoencoder_forward_jit.1} parent=69 // loop_footer
                  %s1545 = sadd.s32 %s1543, 1
                $region83: #{_autoencoder_forward_jit.1} parent=69 // loop_footer_branch
                  %1542 = sbr.rel target = $region79
                $region84: #{_autoencoder_forward_jit.1} parent=69 // loop_exit
                  _
              $region70: #{_autoencoder_forward_jit.1} parent=47 // pred_fallthru
                _
              // Predicated region
              $region85: #{_autoencoder_forward_jit.1} parent=47 // pred_check
                _
              $region86: #{_autoencoder_forward_jit.1} parent=47 // pred_check_branch
                %1561 = sbr.rel target = $region88
              $region87: #{_autoencoder_forward_jit.1} parent=47 // pred_region
                _
              $region88: #{_autoencoder_forward_jit.1} parent=47 // pred_fallthru
                _
            $region48: #{_autoencoder_forward_jit.1} parent=43 // pred_fallthru
              _
            // Predicated region
            $region49: #{_autoencoder_forward_jit.1} parent=43 // pred_check
              _
            $region50: #{_autoencoder_forward_jit.1} parent=43 // pred_check_branch
              %1408 = sbr.rel target = $region52
            $region51: #{_autoencoder_forward_jit.1} parent=43 // pred_region
              %s1410 = sshrl.u32 %s1397, 4
              // While loop
              $region53: #{_autoencoder_forward_jit.1} parent=51 // loop_pre_header
                _
              $region54: #{_autoencoder_forward_jit.1} parent=51 // loop_header
                %s1412 = sphi 0, %s1414
                %p1413 = scmp.ge.s32.totalorder %s1412, %s1410
                %s1417 = sphi 0, %s1454
                %s1418 = sphi %s1390, %s1457
                %s1419 = sphi %s1401, %s1458
              $region55: #{_autoencoder_forward_jit.1} parent=51 // loop_header_branch
                %1416 = sbr.rel (%p1413) target = $region59
              $region56: #{_autoencoder_forward_jit.1} parent=51 // loop_body
                %v1420 = vld [vmem:[%s1418] sm:$0xff]
                %1421 = vst [vmem:[%s1419] sm:$0xff] %v1420
                %v1422 = vld [vmem:[%s1418 + $0x8] sm:$0xff]
                %1423 = vst [vmem:[%s1419 + $0x8] sm:$0xff] %v1422
                %v1424 = vld [vmem:[%s1418 + $0x10] sm:$0xff]
                %1425 = vst [vmem:[%s1419 + $0x10] sm:$0xff] %v1424
                %v1426 = vld [vmem:[%s1418 + $0x18] sm:$0xff]
                %1427 = vst [vmem:[%s1419 + $0x18] sm:$0xff] %v1426
                %v1428 = vld [vmem:[%s1418 + $0x20] sm:$0xff]
                %1429 = vst [vmem:[%s1419 + $0x20] sm:$0xff] %v1428
                %v1430 = vld [vmem:[%s1418 + $0x28] sm:$0xff]
                %1431 = vst [vmem:[%s1419 + $0x28] sm:$0xff] %v1430
                %v1432 = vld [vmem:[%s1418 + $0x30] sm:$0xff]
                %1433 = vst [vmem:[%s1419 + $0x30] sm:$0xff] %v1432
                %v1434 = vld [vmem:[%s1418 + $0x38] sm:$0xff]
                %1435 = vst [vmem:[%s1419 + $0x38] sm:$0xff] %v1434
                %v1436 = vld [vmem:[%s1418 + $0x40] sm:$0xff]
                %1437 = vst [vmem:[%s1419 + $0x40] sm:$0xff] %v1436
                %v1438 = vld [vmem:[%s1418 + $0x48] sm:$0xff]
                %1439 = vst [vmem:[%s1419 + $0x48] sm:$0xff] %v1438
                %v1440 = vld [vmem:[%s1418 + $0x50] sm:$0xff]
                %1441 = vst [vmem:[%s1419 + $0x50] sm:$0xff] %v1440
                %v1442 = vld [vmem:[%s1418 + $0x58] sm:$0xff]
                %1443 = vst [vmem:[%s1419 + $0x58] sm:$0xff] %v1442
                %v1444 = vld [vmem:[%s1418 + $0x60] sm:$0xff]
                %1445 = vst [vmem:[%s1419 + $0x60] sm:$0xff] %v1444
                %v1446 = vld [vmem:[%s1418 + $0x68] sm:$0xff]
                %1447 = vst [vmem:[%s1419 + $0x68] sm:$0xff] %v1446
                %v1448 = vld [vmem:[%s1418 + $0x70] sm:$0xff]
                %1449 = vst [vmem:[%s1419 + $0x70] sm:$0xff] %v1448
                %v1450 = vld [vmem:[%s1418 + $0x78] sm:$0xff]
                %1451 = vst [vmem:[%s1419 + $0x78] sm:$0xff] %v1450
                %s1452 = sadd.s32 1, %s1417
                %p1453 = scmp.ge.s32.totalorder %s1452, %s1410
                %s1454 = scalar_select %p1453, 0, %s1452
                %s1455 = smul.u32 %s1454, 128
                %s1456 = smul.u32 %s1454, 128
                %s1457 = scalar_lea.vmem %s1390, %s1455 [#allocation4]
                %s1458 = scalar_lea.vmem %s1401, %s1456
              $region57: #{_autoencoder_forward_jit.1} parent=51 // loop_footer
                %s1414 = sadd.s32 %s1412, 1
              $region58: #{_autoencoder_forward_jit.1} parent=51 // loop_footer_branch
                %1411 = sbr.rel target = $region54
              $region59: #{_autoencoder_forward_jit.1} parent=51 // loop_exit
                _
              %s1459 = sshrl.u32 %s1397, 4
              %s1460 = sand.u32 %s1397, 15
              %s1461 = smul.u32 %s1459, 16
              %s1462 = smul.u32 8, %s1461
              %s1463 = scalar_lea.vmem %s1390, %s1462 [#allocation4]
              %s1464 = smul.u32 8, %s1461
              %s1465 = scalar_lea.vmem %s1401, %s1464
              // While loop
              $region60: #{_autoencoder_forward_jit.1} parent=51 // loop_pre_header
                _
              $region61: #{_autoencoder_forward_jit.1} parent=51 // loop_header
                %s1467 = sphi 0, %s1469
                %p1468 = scmp.ge.s32.totalorder %s1467, %s1460
                %s1472 = sphi 0, %s1479
                %s1473 = sphi %s1463, %s1482
                %s1474 = sphi %s1465, %s1483
              $region62: #{_autoencoder_forward_jit.1} parent=51 // loop_header_branch
                %1471 = sbr.rel (%p1468) target = $region66
              $region63: #{_autoencoder_forward_jit.1} parent=51 // loop_body
                %v1475 = vld [vmem:[%s1473] sm:$0xff]
                %1476 = vst [vmem:[%s1474] sm:$0xff] %v1475
                %s1477 = sadd.s32 1, %s1472
                %p1478 = scmp.ge.s32.totalorder %s1477, %s1460
                %s1479 = scalar_select %p1478, 0, %s1477
                %s1480 = smul.u32 %s1479, 8
                %s1481 = smul.u32 %s1479, 8
                %s1482 = scalar_lea.vmem %s1463, %s1480 [#allocation4]
                %s1483 = scalar_lea.vmem %s1465, %s1481
              $region64: #{_autoencoder_forward_jit.1} parent=51 // loop_footer
                %s1469 = sadd.s32 %s1467, 1
              $region65: #{_autoencoder_forward_jit.1} parent=51 // loop_footer_branch
                %1466 = sbr.rel target = $region61
              $region66: #{_autoencoder_forward_jit.1} parent=51 // loop_exit
                _
            $region52: #{_autoencoder_forward_jit.1} parent=43 // pred_fallthru
              _
          $region44: #{_autoencoder_forward_jit.1} parent=39 // pred_fallthru
            _
          %1562 = vnop
        $region40: #{_autoencoder_forward_jit.1} parent=31 // pred_fallthru
          _
      $region32: #{_autoencoder_forward_jit.1} parent=5 // pred_fallthru
        _
      %p1563 = scmp.le.s32.totalorder 2, %s10
      // Predicated region
      $region89: #{_autoencoder_forward_jit.1} parent=5 // pred_check
        %p1564 = pneg %p1563
      $region90: #{_autoencoder_forward_jit.1} parent=5 // pred_check_branch
        %1566 = sbr.rel (%p1564) target = $region92
      $region91: #{_autoencoder_forward_jit.1} parent=5 // pred_region
        %s1567 = ssub.s32 %s10, 2
        // Predicated region
        $region93: #{_autoencoder_forward_jit.1} parent=91 // pred_check
          %p1568 = pneg %p107
        $region94: #{_autoencoder_forward_jit.1} parent=91 // pred_check_branch
          %1570 = sbr.rel (%p1568) target = $region96
        $region95: #{_autoencoder_forward_jit.1} parent=91 // pred_region
          %s1571 = sand.u32 %s92, 1
          %s1572 = sand.u32 %s92, 1
          %s1573 = smul.addr %s1572, 128
          %s1574 = scalar_lea.vmem [#allocation4], %s1573
        $region96: #{_autoencoder_forward_jit.1} parent=91 // pred_fallthru
          _
      $region92: #{_autoencoder_forward_jit.1} parent=5 // pred_fallthru
        _
    $region6: #{_autoencoder_forward_jit.1} parent=1 // loop_footer
      %s14 = sadd.s32 1, %s10
    $region7: #{_autoencoder_forward_jit.1} parent=1 // loop_footer_branch
      %9 = sbr.rel target = $region3
    $region8: #{_autoencoder_forward_jit.1} parent=1 // loop_exit
      _
    %1575 = vsyncpa [#allocation3], 1
    %s1576 = scalar_lea.sflag [#allocation3], 1
    %1577 = vsyncpa %s1576, 1

</llo_original>
